<compile_context>
chip_gen: v6e
topology: v6e:2x2x1
jax: 0.10.0
libtpu: 0.0.40
codegen_flags: <defaults>
</compile_context>

<pallas_src>
import functools

import numpy as np
import jax
import jax.numpy as jnp
from jax import lax
from jax.experimental import pallas as pl
from jax.experimental.pallas import tpu as pltpu


# ----------------------------------------------------------------------------
# Host-side constant 0/1 gather matrices (built once per spatial shape).
#   S[t][p, m] = 1 iff flattened input pixel p is the source of tap t for
#   flattened output pixel m (zero column => padding).  `up=2` folds a 2x
#   nearest upsample into the gather.
# ----------------------------------------------------------------------------
def _conv_gather_mats(h_in, w_in, h_out, w_out, k, stride, pad, up=1):
    h_up, w_up = h_in * up, w_in * up
    mats = np.zeros((k * k, h_in * w_in, h_out * w_out), np.float32)
    for dy in range(k):
        for dx in range(k):
            t = dy * k + dx
            for i in range(h_out):
                r = i * stride + dy - pad
                if not (0 <= r < h_up):
                    continue
                for j in range(w_out):
                    c = j * stride + dx - pad
                    if 0 <= c < w_up:
                        mats[t, (r // up) * w_in + (c // up), i * w_out + j] = 1.0
    return mats


def _upsample2x_mat(h, w):
    u = np.zeros((h * w, 4 * h * w), np.float32)
    for r in range(2 * h):
        for c in range(2 * w):
            u[(r // 2) * w + (c // 2), r * (2 * w) + c] = 1.0
    return u


@functools.lru_cache(maxsize=None)
def _selection_mats(H, W):
    """Tap-major concatenated gather matrices, bf16 (0/1 values are exact)."""
    h1, w1 = (H + 2 - 3) // 2 + 1, (W + 2 - 3) // 2 + 1     # conv1: 3x3 s2 p1
    h2, w2 = (h1 + 2 - 3) // 2 + 1, (w1 + 2 - 3) // 2 + 1   # conv2: 3x3 s2 p1
    h3, w3 = 2 * h2, 2 * w2                                  # up2x + 3x3 s1 p1

    def cat(mats):                      # [9, M_in, M_out] -> [M_in, 9*M_out]
        t, m_in, m_out = mats.shape     # column order (tap, m_out)
        return np.ascontiguousarray(
            mats.transpose(1, 0, 2).reshape(m_in, t * m_out))

    S1 = cat(_conv_gather_mats(H, W, h1, w1, k=3, stride=2, pad=1))
    S2 = cat(_conv_gather_mats(h1, w1, h2, w2, k=3, stride=2, pad=1))
    S3 = cat(_conv_gather_mats(h2, w2, h3, w3, k=3, stride=1, pad=1, up=2))
    U4 = _upsample2x_mat(h3, w3)                             # 2x nearest to H,W
    dims = (h1 * w1, h2 * w2, h3 * w3)
    mats = tuple(jnp.asarray(a, jnp.bfloat16) for a in (S1, S2, S3, U4))
    return mats, dims


# ----------------------------------------------------------------------------
# Fused Pallas kernel: backbone + decode head + masked MSE loss, all in VMEM.
# ----------------------------------------------------------------------------
def _fused_forward_kernel(
    x_ref,                                   # [B*Cin, H*W]           f32
    w1_ref, b1_ref,                          # block-diag weights (bf16) / bias
    w2_ref, b2_ref,
    w3_ref, b3_ref,
    w4_ref, b4_ref,
    s1_ref, s2_ref, s3_ref, u4_ref,          # gather / upsample mats (bf16)
    tgt_ref, wgt_ref,                        # [B*K, H*W]             f32
    attr_ref,                                # [B*K]  int32 in SMEM
    preds_ref,                               # out: [B*K, H*W]  f32 (VMEM)
    loss_ref,                                # out: [1, 1]      f32 (SMEM)
    row_ref,                                 # scratch: [B*K,1] f32 (VMEM)
    *, m_outs, n_rows, inv_avg_factor,
):
    def conv_bd_relu(x, s_ref, w_ref, b_ref, m_out):
        # Whole-batch 3x3 conv (stride / pad / optional fused 2x-up encoded in
        # s_ref) as TWO MXU matmuls; bf16 operands, f32 accumulation.
        g = jnp.dot(x.astype(jnp.bfloat16), s_ref[...],
                    preferred_element_type=jnp.float32)      # [B*Cin, 9*M_out]
        # Move the tap axis from lanes to sublanes via 9 static lane slices +
        # a sublane concat (rows ordered (tap, b, c_in), matching W_bd cols).
        g_r = jnp.concatenate(
            [g[:, t * m_out:(t + 1) * m_out] for t in range(9)], axis=0)
        y = jnp.dot(w_ref[...], g_r.astype(jnp.bfloat16),
                    preferred_element_type=jnp.float32)      # [B*Cout, M_out]
        return jnp.maximum(y + b_ref[...], 0.0)              # bias+ReLU in f32

    m1, m2, m3 = m_outs
    x0 = x_ref[...]
    x1 = conv_bd_relu(x0, s1_ref, w1_ref, b1_ref, m1)   # [B*16, (H/2)(W/2)]
    x2 = conv_bd_relu(x1, s2_ref, w2_ref, b2_ref, m2)   # [B*32, (H/4)(W/4)]
    x3 = conv_bd_relu(x2, s3_ref, w3_ref, b3_ref, m3)   # [B*16, (H/2)(W/2)]

    # 1x1 head commutes with nearest upsample: conv at low resolution first,
    # then one upsample-selection matmul -> lane-dense [B*K, H*W] store.
    y = jnp.dot(w4_ref[...], x3.astype(jnp.bfloat16),
                preferred_element_type=jnp.float32) + b4_ref[...]
    preds = jnp.dot(y.astype(jnp.bfloat16), u4_ref[...],
                    preferred_element_type=jnp.float32)      # [B*K, H*W]
    preds_ref[...] = preds

    # Masked / weighted MSE, avg_factor = batch size.  Per-(b,k) row sums are
    # reduced on the VPU; the attr>0 mask is applied with SMEM scalar reads
    # and the scalar loss is written straight to SMEM.
    diff = preds - tgt_ref[...]
    row_ref[...] = jnp.sum(wgt_ref[...] * diff * diff, axis=1, keepdims=True)
    total = jnp.zeros((), jnp.float32)
    for i in range(n_rows):
        total = total + jnp.where(attr_ref[i] > 0, row_ref[i, 0],
                                  jnp.zeros((), jnp.float32))
    loss_ref[0, 0] = total * inv_avg_factor


# ----------------------------------------------------------------------------
# Parameters
# ----------------------------------------------------------------------------
def init_params(key, c_in=4, num_keypoints=8):
    ks = jax.random.split(key, 8)

    def conv_init(kw_key, b_key, c_out, c_in_, kh, kw_):
        fan_in = c_in_ * kh * kw_
        w = jax.random.normal(kw_key, (c_out, c_in_, kh, kw_), jnp.float32)
        w = w * (2.0 / fan_in) ** 0.5
        b = 0.01 * jax.random.normal(b_key, (c_out,), jnp.float32)
        return w, b

    params = {}
    params["bb1_w"], params["bb1_b"] = conv_init(ks[0], ks[1], 16, c_in, 3, 3)
    params["bb2_w"], params["bb2_b"] = conv_init(ks[2], ks[3], 32, 16, 3, 3)
    params["dh1_w"], params["dh1_b"] = conv_init(ks[4], ks[5], 16, 32, 3, 3)
    params["dh2_w"], params["dh2_b"] = conv_init(ks[6], ks[7], num_keypoints, 16, 1, 1)
    return params


def pack_params(params, batch):
    """One-time repack of OIHW weights into batch-block-diagonal bf16 layout.

    W_bd[(b, c_out), (t, b', c_in)] = W[c_out, c_in, tap t] if b == b' else 0,
    so a single matmul applies the conv channel mixing to the whole batch
    without any in-kernel transpose of the batch axis.
    """
    def conv_bd(w, bias):
        w = np.asarray(w, np.float32)
        bias = np.asarray(bias, np.float32)
        c_out, c_in, kh, kw = w.shape
        taps = kh * kw
        w_t = w.transpose(2, 3, 0, 1).reshape(taps, c_out, c_in)
        wbd = np.zeros((batch * c_out, taps * batch * c_in), np.float32)
        for t in range(taps):
            for b in range(batch):
                col0 = t * batch * c_in + b * c_in
                wbd[b * c_out:(b + 1) * c_out, col0:col0 + c_in] = w_t[t]
        bbd = np.tile(bias.reshape(1, c_out), (batch, 1)).reshape(batch * c_out, 1)
        return jnp.asarray(wbd, jnp.bfloat16), jnp.asarray(bbd, jnp.float32)

    packed = {}
    packed["w1"], packed["b1"] = conv_bd(params["bb1_w"], params["bb1_b"])
    packed["w2"], packed["b2"] = conv_bd(params["bb2_w"], params["bb2_b"])
    packed["w3"], packed["b3"] = conv_bd(params["dh1_w"], params["dh1_b"])
    packed["w4"], packed["b4"] = conv_bd(params["dh2_w"], params["dh2_b"])
    return packed


# ----------------------------------------------------------------------------
# Model forward (training branch of _post_process): data -> (preds, loss)
# ----------------------------------------------------------------------------
def heatmap_keypoint_model_forward(packed, data):
    img = data["img"]                              # [B, C_in, H, W] NCHW
    B, C_in, H, W = img.shape
    assert H % 4 == 0 and W % 4 == 0
    gt = data["gt_heatmap"]                        # [B, K, H, W]
    gw = data["gt_heatmap_weight"]                 # [B, K, H, W]
    attr = data["gt_ldmk_attr"]                    # [B, K] int
    K = gt.shape[1]

    (S1, S2, S3, U4), (m1, m2, m3) = _selection_mats(H, W)

    # Row-major-compatible reshapes only (free layout reinterpretation).
    x2d = img.reshape(B * C_in, H * W)
    tgt = gt.reshape(B * K, H * W)
    wgt = gw.reshape(B * K, H * W)
    attr1d = attr.reshape(B * K).astype(jnp.int32)

    operands = (
        x2d,
        packed["w1"], packed["b1"], packed["w2"], packed["b2"],
        packed["w3"], packed["b3"], packed["w4"], packed["b4"],
        S1, S2, S3, U4,
        tgt, wgt, attr1d,
    )

    # VMEM budget sized from the actual resident buffers (+ headroom for the
    # in-kernel intermediates / relayouts) instead of the small default
    # scoped-VMEM limit.
    resident = sum(int(np.prod(a.shape)) * a.dtype.itemsize for a in operands)
    resident += B * K * H * W * 4                       # preds output
    vmem_limit = int(min(100 * 2 ** 20, max(16 * 2 ** 20, 8 * resident)))

    vmem = pl.BlockSpec(memory_space=pltpu.MemorySpace.VMEM)
    smem = pl.BlockSpec(memory_space=pltpu.MemorySpace.SMEM)

    kernel = functools.partial(
        _fused_forward_kernel,
        m_outs=(m1, m2, m3), n_rows=B * K, inv_avg_factor=1.0 / float(B))

    preds2d, loss = pl.pallas_call(
        kernel,
        out_shape=(
            jax.ShapeDtypeStruct((B * K, H * W), jnp.float32),
            jax.ShapeDtypeStruct((1, 1), jnp.float32),
        ),
        in_specs=[vmem] * 15 + [smem],
        out_specs=(vmem, smem),
        scratch_shapes=[pltpu.VMEM((B * K, 1), jnp.float32)],
        compiler_params=pltpu.CompilerParams(vmem_limit_bytes=vmem_limit),
    )(*operands)

    preds = preds2d.reshape(B, K, H, W)   # DeQuantStub is identity
    # TODO(synk): deploy/inference branch (post_process argmax keypoint decode)
    #             is not exercised by this training-mode forward.
    return preds, loss[0, 0]


# ----------------------------------------------------------------------------
# Pure-JAX reference (loose-tolerance correctness smoke-check)
# ----------------------------------------------------------------------------
def _reference_forward(params, data):
    def conv(x, w, b, stride, pad, relu):
        y = lax.conv_general_dilated(
            x, w, (stride, stride), [(pad, pad), (pad, pad)],
            dimension_numbers=("NCHW", "OIHW", "NCHW"))
        y = y + b.reshape(1, -1, 1, 1)
        return jnp.maximum(y, 0.0) if relu else y

    x = data["img"]
    x = conv(x, params["bb1_w"], params["bb1_b"], 2, 1, True)
    x = conv(x, params["bb2_w"], params["bb2_b"], 2, 1, True)
    x = jnp.repeat(jnp.repeat(x, 2, axis=2), 2, axis=3)
    x = conv(x, params["dh1_w"], params["dh1_b"], 1, 1, True)
    x = jnp.repeat(jnp.repeat(x, 2, axis=2), 2, axis=3)
    preds = conv(x, params["dh2_w"], params["dh2_b"], 1, 0, False)
    B, C, _, _ = preds.shape
    valid = (data["gt_ldmk_attr"] > 0).astype(jnp.float32).reshape(B, C, 1, 1)
    diff = preds - data["gt_heatmap"]
    loss = jnp.sum(data["gt_heatmap_weight"] * valid * diff * diff) / B
    return preds, loss


if __name__ == "__main__":
    key = jax.random.PRNGKey(0)
    kp, k1, k2, k3 = jax.random.split(key, 4)

    B, C_in, H, W = 2, 4, 16, 16
    num_keypoints = 8

    params = init_params(kp, c_in=C_in, num_keypoints=num_keypoints)
    packed = pack_params(params, batch=B)

    data = {
        "img": jax.random.normal(k1, (B, C_in, H, W), jnp.float32),
        "gt_heatmap": jax.random.uniform(k2, (B, num_keypoints, H, W), jnp.float32),
        "gt_heatmap_weight": jnp.ones((B, num_keypoints, H, W), jnp.float32),
        "gt_ldmk_attr": (
            jax.random.uniform(k3, (B, num_keypoints)) > 0.3
        ).astype(jnp.int32),
    }

    preds, loss = heatmap_keypoint_model_forward(packed, data)
    jax.block_until_ready((preds, loss))

    assert preds.shape == (B, num_keypoints, H, W)
    assert preds.dtype == jnp.float32
    assert loss.shape == ()

    # Intentionally loose tolerance: MXU operands are bf16 (weights, 0/1
    # selection matrices and activations), accumulation is f32; this matches
    # the ~bf16 default-precision matmul behavior and is not a structural bug.
    ref_preds, ref_loss = _reference_forward(params, data)
    np.testing.assert_allclose(np.asarray(preds), np.asarray(ref_preds),
                               rtol=5e-2, atol=5e-2)
    np.testing.assert_allclose(float(loss), float(ref_loss), rtol=5e-2, atol=5e-2)

    print("KERNEL_OK")
</pallas_src>

<mosaic_0001>
module attributes {stable_mosaic.version = 11 : i64} {
  func.func @_fused_forward_kernel(%arg0: memref<8x256xf32, #tpu.memory_space<vmem>>, %arg1: memref<32x72xbf16, #tpu.memory_space<vmem>>, %arg2: memref<32x1xf32, #tpu.memory_space<vmem>>, %arg3: memref<64x288xbf16, #tpu.memory_space<vmem>>, %arg4: memref<64x1xf32, #tpu.memory_space<vmem>>, %arg5: memref<32x576xbf16, #tpu.memory_space<vmem>>, %arg6: memref<32x1xf32, #tpu.memory_space<vmem>>, %arg7: memref<16x32xbf16, #tpu.memory_space<vmem>>, %arg8: memref<16x1xf32, #tpu.memory_space<vmem>>, %arg9: memref<256x576xbf16, #tpu.memory_space<vmem>>, %arg10: memref<64x144xbf16, #tpu.memory_space<vmem>>, %arg11: memref<16x576xbf16, #tpu.memory_space<vmem>>, %arg12: memref<64x256xbf16, #tpu.memory_space<vmem>>, %arg13: memref<16x256xf32, #tpu.memory_space<vmem>>, %arg14: memref<16x256xf32, #tpu.memory_space<vmem>>, %arg15: memref<16xi32, #tpu.memory_space<smem>>, %arg16: memref<16x256xf32, #tpu.memory_space<vmem>>, %arg17: memref<1x1xf32, #tpu.memory_space<smem>>, %arg18: memref<16x1xf32, #tpu.memory_space<vmem>>) attributes {dimension_semantics = [], scalar_prefetch = 0 : i64, scratch_operands = 1 : i64, tpu.core_type = #tpu.core_type<tc>} {
    %c0 = arith.constant 0 : index
    %c0_0 = arith.constant 0 : index
    %0 = vector.load %arg0[%c0, %c0_0] : memref<8x256xf32, #tpu.memory_space<vmem>>, vector<8x256xf32>
    %1 = arith.truncf %0 : vector<8x256xf32> to vector<8x256xbf16>
    %c0_1 = arith.constant 0 : index
    %c0_2 = arith.constant 0 : index
    %2 = vector.load %arg9[%c0_1, %c0_2] : memref<256x576xbf16, #tpu.memory_space<vmem>>, vector<256x576xbf16>
    %cst = arith.constant dense<0.000000e+00> : vector<8x576xf32>
    %3 = tpu.matmul %1, %2, %cst {dimension_numbers = #tpu.dot_dimension_numbers<[1], [0], [0], [1], [0, 0, 1, 1], [], []>} : vector<8x256xbf16>, vector<256x576xbf16>, vector<8x576xf32> -> vector<8x576xf32>
    %4 = vector.extract_strided_slice %3 {offsets = [0, 0], sizes = [8, 64], strides = [1, 1]} : vector<8x576xf32> to vector<8x64xf32>
    %5 = vector.extract_strided_slice %3 {offsets = [0, 64], sizes = [8, 64], strides = [1, 1]} : vector<8x576xf32> to vector<8x64xf32>
    %6 = vector.extract_strided_slice %3 {offsets = [0, 128], sizes = [8, 64], strides = [1, 1]} : vector<8x576xf32> to vector<8x64xf32>
    %7 = vector.extract_strided_slice %3 {offsets = [0, 192], sizes = [8, 64], strides = [1, 1]} : vector<8x576xf32> to vector<8x64xf32>
    %8 = vector.extract_strided_slice %3 {offsets = [0, 256], sizes = [8, 64], strides = [1, 1]} : vector<8x576xf32> to vector<8x64xf32>
    %9 = vector.extract_strided_slice %3 {offsets = [0, 320], sizes = [8, 64], strides = [1, 1]} : vector<8x576xf32> to vector<8x64xf32>
    %10 = vector.extract_strided_slice %3 {offsets = [0, 384], sizes = [8, 64], strides = [1, 1]} : vector<8x576xf32> to vector<8x64xf32>
    %11 = vector.extract_strided_slice %3 {offsets = [0, 448], sizes = [8, 64], strides = [1, 1]} : vector<8x576xf32> to vector<8x64xf32>
    %12 = vector.extract_strided_slice %3 {offsets = [0, 512], sizes = [8, 64], strides = [1, 1]} : vector<8x576xf32> to vector<8x64xf32>
    %13 = tpu.concatenate %4, %5, %6, %7, %8, %9, %10, %11, %12 in 0 : vector<8x64xf32>, vector<8x64xf32>, vector<8x64xf32>, vector<8x64xf32>, vector<8x64xf32>, vector<8x64xf32>, vector<8x64xf32>, vector<8x64xf32>, vector<8x64xf32> -> vector<72x64xf32>
    %c0_3 = arith.constant 0 : index
    %c0_4 = arith.constant 0 : index
    %14 = vector.load %arg1[%c0_3, %c0_4] : memref<32x72xbf16, #tpu.memory_space<vmem>>, vector<32x72xbf16>
    %15 = arith.truncf %13 : vector<72x64xf32> to vector<72x64xbf16>
    %cst_5 = arith.constant dense<0.000000e+00> : vector<32x64xf32>
    %16 = tpu.matmul %14, %15, %cst_5 {dimension_numbers = #tpu.dot_dimension_numbers<[1], [0], [0], [1], [0, 0, 1, 1], [], []>} : vector<32x72xbf16>, vector<72x64xbf16>, vector<32x64xf32> -> vector<32x64xf32>
    %c0_6 = arith.constant 0 : index
    %c0_7 = arith.constant 0 : index
    %17 = vector.load %arg2[%c0_6, %c0_7] : memref<32x1xf32, #tpu.memory_space<vmem>>, vector<32x1xf32>
    %18 = vector.broadcast %17 : vector<32x1xf32> to vector<32x64xf32>
    %19 = arith.addf %16, %18 : vector<32x64xf32>
    %cst_8 = arith.constant 0.000000e+00 : f32
    %20 = vector.broadcast %cst_8 : f32 to vector<32x64xf32>
    %21 = arith.maximumf %19, %20 : vector<32x64xf32>
    %22 = arith.truncf %21 : vector<32x64xf32> to vector<32x64xbf16>
    %c0_9 = arith.constant 0 : index
    %c0_10 = arith.constant 0 : index
    %23 = vector.load %arg10[%c0_9, %c0_10] : memref<64x144xbf16, #tpu.memory_space<vmem>>, vector<64x144xbf16>
    %cst_11 = arith.constant dense<0.000000e+00> : vector<32x144xf32>
    %24 = tpu.matmul %22, %23, %cst_11 {dimension_numbers = #tpu.dot_dimension_numbers<[1], [0], [0], [1], [0, 0, 1, 1], [], []>} : vector<32x64xbf16>, vector<64x144xbf16>, vector<32x144xf32> -> vector<32x144xf32>
    %25 = vector.extract_strided_slice %24 {offsets = [0, 0], sizes = [32, 16], strides = [1, 1]} : vector<32x144xf32> to vector<32x16xf32>
    %26 = vector.extract_strided_slice %24 {offsets = [0, 16], sizes = [32, 16], strides = [1, 1]} : vector<32x144xf32> to vector<32x16xf32>
    %27 = vector.extract_strided_slice %24 {offsets = [0, 32], sizes = [32, 16], strides = [1, 1]} : vector<32x144xf32> to vector<32x16xf32>
    %28 = vector.extract_strided_slice %24 {offsets = [0, 48], sizes = [32, 16], strides = [1, 1]} : vector<32x144xf32> to vector<32x16xf32>
    %29 = vector.extract_strided_slice %24 {offsets = [0, 64], sizes = [32, 16], strides = [1, 1]} : vector<32x144xf32> to vector<32x16xf32>
    %30 = vector.extract_strided_slice %24 {offsets = [0, 80], sizes = [32, 16], strides = [1, 1]} : vector<32x144xf32> to vector<32x16xf32>
    %31 = vector.extract_strided_slice %24 {offsets = [0, 96], sizes = [32, 16], strides = [1, 1]} : vector<32x144xf32> to vector<32x16xf32>
    %32 = vector.extract_strided_slice %24 {offsets = [0, 112], sizes = [32, 16], strides = [1, 1]} : vector<32x144xf32> to vector<32x16xf32>
    %33 = vector.extract_strided_slice %24 {offsets = [0, 128], sizes = [32, 16], strides = [1, 1]} : vector<32x144xf32> to vector<32x16xf32>
    %34 = tpu.concatenate %25, %26, %27, %28, %29, %30, %31, %32, %33 in 0 : vector<32x16xf32>, vector<32x16xf32>, vector<32x16xf32>, vector<32x16xf32>, vector<32x16xf32>, vector<32x16xf32>, vector<32x16xf32>, vector<32x16xf32>, vector<32x16xf32> -> vector<288x16xf32>
    %c0_12 = arith.constant 0 : index
    %c0_13 = arith.constant 0 : index
    %35 = vector.load %arg3[%c0_12, %c0_13] : memref<64x288xbf16, #tpu.memory_space<vmem>>, vector<64x288xbf16>
    %36 = arith.truncf %34 : vector<288x16xf32> to vector<288x16xbf16>
    %cst_14 = arith.constant dense<0.000000e+00> : vector<64x16xf32>
    %37 = tpu.matmul %35, %36, %cst_14 {dimension_numbers = #tpu.dot_dimension_numbers<[1], [0], [0], [1], [0, 0, 1, 1], [], []>} : vector<64x288xbf16>, vector<288x16xbf16>, vector<64x16xf32> -> vector<64x16xf32>
    %c0_15 = arith.constant 0 : index
    %c0_16 = arith.constant 0 : index
    %38 = vector.load %arg4[%c0_15, %c0_16] : memref<64x1xf32, #tpu.memory_space<vmem>>, vector<64x1xf32>
    %39 = vector.broadcast %38 : vector<64x1xf32> to vector<64x16xf32>
    %40 = arith.addf %37, %39 : vector<64x16xf32>
    %cst_17 = arith.constant 0.000000e+00 : f32
    %41 = vector.broadcast %cst_17 : f32 to vector<64x16xf32>
    %42 = arith.maximumf %40, %41 : vector<64x16xf32>
    %43 = arith.truncf %42 : vector<64x16xf32> to vector<64x16xbf16>
    %c0_18 = arith.constant 0 : index
    %c0_19 = arith.constant 0 : index
    %44 = vector.load %arg11[%c0_18, %c0_19] : memref<16x576xbf16, #tpu.memory_space<vmem>>, vector<16x576xbf16>
    %cst_20 = arith.constant dense<0.000000e+00> : vector<64x576xf32>
    %45 = tpu.matmul %43, %44, %cst_20 {dimension_numbers = #tpu.dot_dimension_numbers<[1], [0], [0], [1], [0, 0, 1, 1], [], []>} : vector<64x16xbf16>, vector<16x576xbf16>, vector<64x576xf32> -> vector<64x576xf32>
    %46 = vector.extract_strided_slice %45 {offsets = [0, 0], sizes = [64, 64], strides = [1, 1]} : vector<64x576xf32> to vector<64x64xf32>
    %47 = vector.extract_strided_slice %45 {offsets = [0, 64], sizes = [64, 64], strides = [1, 1]} : vector<64x576xf32> to vector<64x64xf32>
    %48 = vector.extract_strided_slice %45 {offsets = [0, 128], sizes = [64, 64], strides = [1, 1]} : vector<64x576xf32> to vector<64x64xf32>
    %49 = vector.extract_strided_slice %45 {offsets = [0, 192], sizes = [64, 64], strides = [1, 1]} : vector<64x576xf32> to vector<64x64xf32>
    %50 = vector.extract_strided_slice %45 {offsets = [0, 256], sizes = [64, 64], strides = [1, 1]} : vector<64x576xf32> to vector<64x64xf32>
    %51 = vector.extract_strided_slice %45 {offsets = [0, 320], sizes = [64, 64], strides = [1, 1]} : vector<64x576xf32> to vector<64x64xf32>
    %52 = vector.extract_strided_slice %45 {offsets = [0, 384], sizes = [64, 64], strides = [1, 1]} : vector<64x576xf32> to vector<64x64xf32>
    %53 = vector.extract_strided_slice %45 {offsets = [0, 448], sizes = [64, 64], strides = [1, 1]} : vector<64x576xf32> to vector<64x64xf32>
    %54 = vector.extract_strided_slice %45 {offsets = [0, 512], sizes = [64, 64], strides = [1, 1]} : vector<64x576xf32> to vector<64x64xf32>
    %55 = tpu.concatenate %46, %47, %48, %49, %50, %51, %52, %53, %54 in 0 : vector<64x64xf32>, vector<64x64xf32>, vector<64x64xf32>, vector<64x64xf32>, vector<64x64xf32>, vector<64x64xf32>, vector<64x64xf32>, vector<64x64xf32>, vector<64x64xf32> -> vector<576x64xf32>
    %c0_21 = arith.constant 0 : index
    %c0_22 = arith.constant 0 : index
    %56 = vector.load %arg5[%c0_21, %c0_22] : memref<32x576xbf16, #tpu.memory_space<vmem>>, vector<32x576xbf16>
    %57 = arith.truncf %55 : vector<576x64xf32> to vector<576x64xbf16>
    %cst_23 = arith.constant dense<0.000000e+00> : vector<32x64xf32>
    %58 = tpu.matmul %56, %57, %cst_23 {dimension_numbers = #tpu.dot_dimension_numbers<[1], [0], [0], [1], [0, 0, 1, 1], [], []>} : vector<32x576xbf16>, vector<576x64xbf16>, vector<32x64xf32> -> vector<32x64xf32>
    %c0_24 = arith.constant 0 : index
    %c0_25 = arith.constant 0 : index
    %59 = vector.load %arg6[%c0_24, %c0_25] : memref<32x1xf32, #tpu.memory_space<vmem>>, vector<32x1xf32>
    %60 = vector.broadcast %59 : vector<32x1xf32> to vector<32x64xf32>
    %61 = arith.addf %58, %60 : vector<32x64xf32>
    %cst_26 = arith.constant 0.000000e+00 : f32
    %62 = vector.broadcast %cst_26 : f32 to vector<32x64xf32>
    %63 = arith.maximumf %61, %62 : vector<32x64xf32>
    %c0_27 = arith.constant 0 : index
    %c0_28 = arith.constant 0 : index
    %64 = vector.load %arg7[%c0_27, %c0_28] : memref<16x32xbf16, #tpu.memory_space<vmem>>, vector<16x32xbf16>
    %65 = arith.truncf %63 : vector<32x64xf32> to vector<32x64xbf16>
    %cst_29 = arith.constant dense<0.000000e+00> : vector<16x64xf32>
    %66 = tpu.matmul %64, %65, %cst_29 {dimension_numbers = #tpu.dot_dimension_numbers<[1], [0], [0], [1], [0, 0, 1, 1], [], []>} : vector<16x32xbf16>, vector<32x64xbf16>, vector<16x64xf32> -> vector<16x64xf32>
    %c0_30 = arith.constant 0 : index
    %c0_31 = arith.constant 0 : index
    %67 = vector.load %arg8[%c0_30, %c0_31] : memref<16x1xf32, #tpu.memory_space<vmem>>, vector<16x1xf32>
    %68 = vector.broadcast %67 : vector<16x1xf32> to vector<16x64xf32>
    %69 = arith.addf %66, %68 : vector<16x64xf32>
    %70 = arith.truncf %69 : vector<16x64xf32> to vector<16x64xbf16>
    %c0_32 = arith.constant 0 : index
    %c0_33 = arith.constant 0 : index
    %71 = vector.load %arg12[%c0_32, %c0_33] : memref<64x256xbf16, #tpu.memory_space<vmem>>, vector<64x256xbf16>
    %cst_34 = arith.constant dense<0.000000e+00> : vector<16x256xf32>
    %72 = tpu.matmul %70, %71, %cst_34 {dimension_numbers = #tpu.dot_dimension_numbers<[1], [0], [0], [1], [0, 0, 1, 1], [], []>} : vector<16x64xbf16>, vector<64x256xbf16>, vector<16x256xf32> -> vector<16x256xf32>
    %c0_35 = arith.constant 0 : index
    %c0_36 = arith.constant 0 : index
    %73 = vector.load %arg16[%c0_35, %c0_36] : memref<16x256xf32, #tpu.memory_space<vmem>>, vector<16x256xf32>
    tpu.vector_store %arg16[%c0_35, %c0_36], %72 {strides = array<i32>} : memref<16x256xf32, #tpu.memory_space<vmem>>, vector<16x256xf32>,
    %c0_37 = arith.constant 0 : index
    %c0_38 = arith.constant 0 : index
    %74 = vector.load %arg13[%c0_37, %c0_38] : memref<16x256xf32, #tpu.memory_space<vmem>>, vector<16x256xf32>
    %75 = arith.subf %72, %74 : vector<16x256xf32>
    %c0_39 = arith.constant 0 : index
    %c0_40 = arith.constant 0 : index
    %76 = vector.load %arg14[%c0_39, %c0_40] : memref<16x256xf32, #tpu.memory_space<vmem>>, vector<16x256xf32>
    %77 = arith.mulf %76, %75 : vector<16x256xf32>
    %78 = arith.mulf %77, %75 : vector<16x256xf32>
    %cst_41 = arith.constant dense<0.000000e+00> : vector<16xf32>
    %79 = vector.multi_reduction <add>, %78, %cst_41 [1] : vector<16x256xf32> to vector<16xf32>
    %80 = vector.shape_cast %79 : vector<16xf32> to vector<16x1xf32>
    %c0_42 = arith.constant 0 : index
    %c0_43 = arith.constant 0 : index
    %81 = vector.load %arg18[%c0_42, %c0_43] : memref<16x1xf32, #tpu.memory_space<vmem>>, vector<16x1xf32>
    tpu.vector_store %arg18[%c0_42, %c0_43], %80 {strides = array<i32>} : memref<16x1xf32, #tpu.memory_space<vmem>>, vector<16x1xf32>,
    %c0_44 = arith.constant 0 : index
    %82 = memref.load %arg15[%c0_44] : memref<16xi32, #tpu.memory_space<smem>>
    %c0_i32 = arith.constant 0 : i32
    %83 = arith.cmpi sgt, %82, %c0_i32 : i32
    %c0_45 = arith.constant 0 : index
    %c0_46 = arith.constant 0 : index
    %84 = vector.load %arg18[%c0_45, %c0_46] : memref<16x1xf32, #tpu.memory_space<vmem>>, vector<1x1xf32>
    %85 = vector.extract %84[0, 0] : f32 from vector<1x1xf32>
    %cst_47 = arith.constant 0.000000e+00 : f32
    %86 = arith.select %83, %85, %cst_47 : f32
    %cst_48 = arith.constant 0.000000e+00 : f32
    %87 = arith.addf %cst_48, %86 : f32
    %c1 = arith.constant 1 : index
    %88 = memref.load %arg15[%c1] : memref<16xi32, #tpu.memory_space<smem>>
    %c0_i32_49 = arith.constant 0 : i32
    %89 = arith.cmpi sgt, %88, %c0_i32_49 : i32
    %c1_50 = arith.constant 1 : index
    %c0_51 = arith.constant 0 : index
    %90 = vector.load %arg18[%c1_50, %c0_51] : memref<16x1xf32, #tpu.memory_space<vmem>>, vector<1x1xf32>
    %91 = vector.extract %90[0, 0] : f32 from vector<1x1xf32>
    %cst_52 = arith.constant 0.000000e+00 : f32
    %92 = arith.select %89, %91, %cst_52 : f32
    %93 = arith.addf %87, %92 : f32
    %c2 = arith.constant 2 : index
    %94 = memref.load %arg15[%c2] : memref<16xi32, #tpu.memory_space<smem>>
    %c0_i32_53 = arith.constant 0 : i32
    %95 = arith.cmpi sgt, %94, %c0_i32_53 : i32
    %c2_54 = arith.constant 2 : index
    %c0_55 = arith.constant 0 : index
    %96 = vector.load %arg18[%c2_54, %c0_55] : memref<16x1xf32, #tpu.memory_space<vmem>>, vector<1x1xf32>
    %97 = vector.extract %96[0, 0] : f32 from vector<1x1xf32>
    %cst_56 = arith.constant 0.000000e+00 : f32
    %98 = arith.select %95, %97, %cst_56 : f32
    %99 = arith.addf %93, %98 : f32
    %c3 = arith.constant 3 : index
    %100 = memref.load %arg15[%c3] : memref<16xi32, #tpu.memory_space<smem>>
    %c0_i32_57 = arith.constant 0 : i32
    %101 = arith.cmpi sgt, %100, %c0_i32_57 : i32
    %c3_58 = arith.constant 3 : index
    %c0_59 = arith.constant 0 : index
    %102 = vector.load %arg18[%c3_58, %c0_59] : memref<16x1xf32, #tpu.memory_space<vmem>>, vector<1x1xf32>
    %103 = vector.extract %102[0, 0] : f32 from vector<1x1xf32>
    %cst_60 = arith.constant 0.000000e+00 : f32
    %104 = arith.select %101, %103, %cst_60 : f32
    %105 = arith.addf %99, %104 : f32
    %c4 = arith.constant 4 : index
    %106 = memref.load %arg15[%c4] : memref<16xi32, #tpu.memory_space<smem>>
    %c0_i32_61 = arith.constant 0 : i32
    %107 = arith.cmpi sgt, %106, %c0_i32_61 : i32
    %c4_62 = arith.constant 4 : index
    %c0_63 = arith.constant 0 : index
    %108 = vector.load %arg18[%c4_62, %c0_63] : memref<16x1xf32, #tpu.memory_space<vmem>>, vector<1x1xf32>
    %109 = vector.extract %108[0, 0] : f32 from vector<1x1xf32>
    %cst_64 = arith.constant 0.000000e+00 : f32
    %110 = arith.select %107, %109, %cst_64 : f32
    %111 = arith.addf %105, %110 : f32
    %c5 = arith.constant 5 : index
    %112 = memref.load %arg15[%c5] : memref<16xi32, #tpu.memory_space<smem>>
    %c0_i32_65 = arith.constant 0 : i32
    %113 = arith.cmpi sgt, %112, %c0_i32_65 : i32
    %c5_66 = arith.constant 5 : index
    %c0_67 = arith.constant 0 : index
    %114 = vector.load %arg18[%c5_66, %c0_67] : memref<16x1xf32, #tpu.memory_space<vmem>>, vector<1x1xf32>
    %115 = vector.extract %114[0, 0] : f32 from vector<1x1xf32>
    %cst_68 = arith.constant 0.000000e+00 : f32
    %116 = arith.select %113, %115, %cst_68 : f32
    %117 = arith.addf %111, %116 : f32
    %c6 = arith.constant 6 : index
    %118 = memref.load %arg15[%c6] : memref<16xi32, #tpu.memory_space<smem>>
    %c0_i32_69 = arith.constant 0 : i32
    %119 = arith.cmpi sgt, %118, %c0_i32_69 : i32
    %c6_70 = arith.constant 6 : index
    %c0_71 = arith.constant 0 : index
    %120 = vector.load %arg18[%c6_70, %c0_71] : memref<16x1xf32, #tpu.memory_space<vmem>>, vector<1x1xf32>
    %121 = vector.extract %120[0, 0] : f32 from vector<1x1xf32>
    %cst_72 = arith.constant 0.000000e+00 : f32
    %122 = arith.select %119, %121, %cst_72 : f32
    %123 = arith.addf %117, %122 : f32
    %c7 = arith.constant 7 : index
    %124 = memref.load %arg15[%c7] : memref<16xi32, #tpu.memory_space<smem>>
    %c0_i32_73 = arith.constant 0 : i32
    %125 = arith.cmpi sgt, %124, %c0_i32_73 : i32
    %c7_74 = arith.constant 7 : index
    %c0_75 = arith.constant 0 : index
    %126 = vector.load %arg18[%c7_74, %c0_75] : memref<16x1xf32, #tpu.memory_space<vmem>>, vector<1x1xf32>
    %127 = vector.extract %126[0, 0] : f32 from vector<1x1xf32>
    %cst_76 = arith.constant 0.000000e+00 : f32
    %128 = arith.select %125, %127, %cst_76 : f32
    %129 = arith.addf %123, %128 : f32
    %c8 = arith.constant 8 : index
    %130 = memref.load %arg15[%c8] : memref<16xi32, #tpu.memory_space<smem>>
    %c0_i32_77 = arith.constant 0 : i32
    %131 = arith.cmpi sgt, %130, %c0_i32_77 : i32
    %c8_78 = arith.constant 8 : index
    %c0_79 = arith.constant 0 : index
    %132 = vector.load %arg18[%c8_78, %c0_79] : memref<16x1xf32, #tpu.memory_space<vmem>>, vector<1x1xf32>
    %133 = vector.extract %132[0, 0] : f32 from vector<1x1xf32>
    %cst_80 = arith.constant 0.000000e+00 : f32
    %134 = arith.select %131, %133, %cst_80 : f32
    %135 = arith.addf %129, %134 : f32
    %c9 = arith.constant 9 : index
    %136 = memref.load %arg15[%c9] : memref<16xi32, #tpu.memory_space<smem>>
    %c0_i32_81 = arith.constant 0 : i32
    %137 = arith.cmpi sgt, %136, %c0_i32_81 : i32
    %c9_82 = arith.constant 9 : index
    %c0_83 = arith.constant 0 : index
    %138 = vector.load %arg18[%c9_82, %c0_83] : memref<16x1xf32, #tpu.memory_space<vmem>>, vector<1x1xf32>
    %139 = vector.extract %138[0, 0] : f32 from vector<1x1xf32>
    %cst_84 = arith.constant 0.000000e+00 : f32
    %140 = arith.select %137, %139, %cst_84 : f32
    %141 = arith.addf %135, %140 : f32
    %c10 = arith.constant 10 : index
    %142 = memref.load %arg15[%c10] : memref<16xi32, #tpu.memory_space<smem>>
    %c0_i32_85 = arith.constant 0 : i32
    %143 = arith.cmpi sgt, %142, %c0_i32_85 : i32
    %c10_86 = arith.constant 10 : index
    %c0_87 = arith.constant 0 : index
    %144 = vector.load %arg18[%c10_86, %c0_87] : memref<16x1xf32, #tpu.memory_space<vmem>>, vector<1x1xf32>
    %145 = vector.extract %144[0, 0] : f32 from vector<1x1xf32>
    %cst_88 = arith.constant 0.000000e+00 : f32
    %146 = arith.select %143, %145, %cst_88 : f32
    %147 = arith.addf %141, %146 : f32
    %c11 = arith.constant 11 : index
    %148 = memref.load %arg15[%c11] : memref<16xi32, #tpu.memory_space<smem>>
    %c0_i32_89 = arith.constant 0 : i32
    %149 = arith.cmpi sgt, %148, %c0_i32_89 : i32
    %c11_90 = arith.constant 11 : index
    %c0_91 = arith.constant 0 : index
    %150 = vector.load %arg18[%c11_90, %c0_91] : memref<16x1xf32, #tpu.memory_space<vmem>>, vector<1x1xf32>
    %151 = vector.extract %150[0, 0] : f32 from vector<1x1xf32>
    %cst_92 = arith.constant 0.000000e+00 : f32
    %152 = arith.select %149, %151, %cst_92 : f32
    %153 = arith.addf %147, %152 : f32
    %c12 = arith.constant 12 : index
    %154 = memref.load %arg15[%c12] : memref<16xi32, #tpu.memory_space<smem>>
    %c0_i32_93 = arith.constant 0 : i32
    %155 = arith.cmpi sgt, %154, %c0_i32_93 : i32
    %c12_94 = arith.constant 12 : index
    %c0_95 = arith.constant 0 : index
    %156 = vector.load %arg18[%c12_94, %c0_95] : memref<16x1xf32, #tpu.memory_space<vmem>>, vector<1x1xf32>
    %157 = vector.extract %156[0, 0] : f32 from vector<1x1xf32>
    %cst_96 = arith.constant 0.000000e+00 : f32
    %158 = arith.select %155, %157, %cst_96 : f32
    %159 = arith.addf %153, %158 : f32
    %c13 = arith.constant 13 : index
    %160 = memref.load %arg15[%c13] : memref<16xi32, #tpu.memory_space<smem>>
    %c0_i32_97 = arith.constant 0 : i32
    %161 = arith.cmpi sgt, %160, %c0_i32_97 : i32
    %c13_98 = arith.constant 13 : index
    %c0_99 = arith.constant 0 : index
    %162 = vector.load %arg18[%c13_98, %c0_99] : memref<16x1xf32, #tpu.memory_space<vmem>>, vector<1x1xf32>
    %163 = vector.extract %162[0, 0] : f32 from vector<1x1xf32>
    %cst_100 = arith.constant 0.000000e+00 : f32
    %164 = arith.select %161, %163, %cst_100 : f32
    %165 = arith.addf %159, %164 : f32
    %c14 = arith.constant 14 : index
    %166 = memref.load %arg15[%c14] : memref<16xi32, #tpu.memory_space<smem>>
    %c0_i32_101 = arith.constant 0 : i32
    %167 = arith.cmpi sgt, %166, %c0_i32_101 : i32
    %c14_102 = arith.constant 14 : index
    %c0_103 = arith.constant 0 : index
    %168 = vector.load %arg18[%c14_102, %c0_103] : memref<16x1xf32, #tpu.memory_space<vmem>>, vector<1x1xf32>
    %169 = vector.extract %168[0, 0] : f32 from vector<1x1xf32>
    %cst_104 = arith.constant 0.000000e+00 : f32
    %170 = arith.select %167, %169, %cst_104 : f32
    %171 = arith.addf %165, %170 : f32
    %c15 = arith.constant 15 : index
    %172 = memref.load %arg15[%c15] : memref<16xi32, #tpu.memory_space<smem>>
    %c0_i32_105 = arith.constant 0 : i32
    %173 = arith.cmpi sgt, %172, %c0_i32_105 : i32
    %c15_106 = arith.constant 15 : index
    %c0_107 = arith.constant 0 : index
    %174 = vector.load %arg18[%c15_106, %c0_107] : memref<16x1xf32, #tpu.memory_space<vmem>>, vector<1x1xf32>
    %175 = vector.extract %174[0, 0] : f32 from vector<1x1xf32>
    %cst_108 = arith.constant 0.000000e+00 : f32
    %176 = arith.select %173, %175, %cst_108 : f32
    %177 = arith.addf %171, %176 : f32
    %cst_109 = arith.constant 5.000000e-01 : f32
    %178 = arith.mulf %177, %cst_109 : f32
    %c0_110 = arith.constant 0 : index
    %c0_111 = arith.constant 0 : index
    %179 = memref.load %arg17[%c0_110, %c0_111] : memref<1x1xf32, #tpu.memory_space<smem>>
    memref.store %178, %arg17[%c0_110, %c0_111] : memref<1x1xf32, #tpu.memory_space<smem>>
    return
  }
}

</mosaic_0001>

<llo_original>
// kernel: tpu_custom_call.1
$region0: #{tpu_custom_call.1}
  #allocation0 [shape = 'u32[]', space=smem, size = 0x4, offset = 0x4, fixed_abs, tag = 'smem constant byte address 0x4 - core index']
  #allocation1 [shape = 'u32[144,128]{1,0:T(1,128)}', space=vmem, size = 0x12000, scoped, tag = 'internal scratch']
  #allocation2 [shape = 'f32[16,1]{1,0:T(8,128)}', space=vmem, size = 0x2000, scoped, tag = 'scratch operand']
  %s0 = inlined_call_operand.vmem [shape: f32[8,256], index: 0, kind: input, shape index: {}]
  %s1 = inlined_call_operand.vmem [shape: bf16[32,72], index: 1, kind: input, shape index: {}]
  %s2 = inlined_call_operand.vmem [shape: f32[32,1], index: 2, kind: input, shape index: {}]
  %s3 = inlined_call_operand.vmem [shape: bf16[64,288], index: 3, kind: input, shape index: {}]
  %s4 = inlined_call_operand.vmem [shape: f32[64,1], index: 4, kind: input, shape index: {}]
  %s5 = inlined_call_operand.vmem [shape: bf16[32,576], index: 5, kind: input, shape index: {}]
  %s6 = inlined_call_operand.vmem [shape: f32[32,1], index: 6, kind: input, shape index: {}]
  %s7 = inlined_call_operand.vmem [shape: bf16[16,32], index: 7, kind: input, shape index: {}]
  %s8 = inlined_call_operand.vmem [shape: f32[16,1], index: 8, kind: input, shape index: {}]
  %s9 = inlined_call_operand.vmem [shape: bf16[256,576], index: 9, kind: input, shape index: {}]
  %s10 = inlined_call_operand.vmem [shape: bf16[64,144], index: 10, kind: input, shape index: {}]
  %s11 = inlined_call_operand.vmem [shape: bf16[16,576], index: 11, kind: input, shape index: {}]
  %s12 = inlined_call_operand.vmem [shape: bf16[64,256], index: 12, kind: input, shape index: {}]
  %s13 = inlined_call_operand.vmem [shape: f32[16,256], index: 13, kind: input, shape index: {}]
  %s14 = inlined_call_operand.vmem [shape: f32[16,256], index: 14, kind: input, shape index: {}]
  %s15 = inlined_call_operand.vmem [shape: s32[16], index: 15, kind: input, shape index: {}]
  %s16 = inlined_call_operand.hbm [shape: f32[16,256], index: 16, kind: output, shape index: {0}]
  %s17 = inlined_call_operand.hbm [shape: f32[1,1], index: 17, kind: output, shape index: {1}]
  %18 = xla_tuple %s16, %s17
  %s19 = sld [smem:[#allocation0]]
  $region86: #{tpu_custom_call.1} parent=0
    _
  %s21 = ssub.s32 1, %s19
  %s22 = scalar_select 0, %s21, %s19
  $region1: #{tpu_custom_call.1} parent=0
    #allocation3 [shape = 'u8[512]{0}', space=smem, size = 0x200, scoped, tag = 'input window, operand 15, single buffered']
    #allocation4 [shape = 's32[1]{0}', space=sflag, size = 0x4, scoped, tag = 'scoped memory for tpu_custom_call.1']
    #allocation5 [shape = 's32[1]{0}', space=sflag, size = 0x4, scoped, tag = 'scoped memory for tpu_custom_call.1']
    #allocation6 [shape = 's32[1]{0}', space=sflag, size = 0x4, scoped, tag = 'scoped memory for tpu_custom_call.1']
    #allocation7 [shape = 'u8[16384]{0}', space=vmem, size = 0x4000, scoped, tag = 'output window, operand 0, single buffered']
    #allocation8 [shape = 'u8[512]{0}', space=smem, size = 0x200, scoped, tag = 'output window, operand 1, single buffered']
    %23 = vsyncpa [#allocation6], 0
    %24 = vsyncpa [#allocation4], 0
    %25 = vsyncpa [#allocation5], 0
    // Predicated region
    $region2: #{tpu_custom_call.1} parent=1 // pred_check
      _
    $region3: #{tpu_custom_call.1} parent=1 // pred_check_branch
      %27 = sbr.rel (0) target = $region5
    $region4: #{tpu_custom_call.1} parent=1 // pred_region
      _
    $region5: #{tpu_custom_call.1} parent=1 // pred_fallthru
      _
    // Predicated region
    $region6: #{tpu_custom_call.1} parent=1 // pred_check
      _
    $region7: #{tpu_custom_call.1} parent=1 // pred_check_branch
      %29 = sbr.rel (0) target = $region9
    $region8: #{tpu_custom_call.1} parent=1 // pred_region
      _
    $region9: #{tpu_custom_call.1} parent=1 // pred_fallthru
      _
    // Predicated region
    $region10: #{tpu_custom_call.1} parent=1 // pred_check
      _
    $region11: #{tpu_custom_call.1} parent=1 // pred_check_branch
      %31 = sbr.rel (0) target = $region13
    $region12: #{tpu_custom_call.1} parent=1 // pred_region
      _
    $region13: #{tpu_custom_call.1} parent=1 // pred_fallthru
      _
    // Predicated region
    $region14: #{tpu_custom_call.1} parent=1 // pred_check
      _
    $region15: #{tpu_custom_call.1} parent=1 // pred_check_branch
      %33 = sbr.rel (0) target = $region17
    $region16: #{tpu_custom_call.1} parent=1 // pred_region
      _
    $region17: #{tpu_custom_call.1} parent=1 // pred_fallthru
      _
    // Predicated region
    $region18: #{tpu_custom_call.1} parent=1 // pred_check
      _
    $region19: #{tpu_custom_call.1} parent=1 // pred_check_branch
      %35 = sbr.rel (0) target = $region21
    $region20: #{tpu_custom_call.1} parent=1 // pred_region
      _
    $region21: #{tpu_custom_call.1} parent=1 // pred_fallthru
      _
    // Predicated region
    $region22: #{tpu_custom_call.1} parent=1 // pred_check
      _
    $region23: #{tpu_custom_call.1} parent=1 // pred_check_branch
      %37 = sbr.rel (0) target = $region25
    $region24: #{tpu_custom_call.1} parent=1 // pred_region
      _
    $region25: #{tpu_custom_call.1} parent=1 // pred_fallthru
      _
    // Predicated region
    $region26: #{tpu_custom_call.1} parent=1 // pred_check
      _
    $region27: #{tpu_custom_call.1} parent=1 // pred_check_branch
      %39 = sbr.rel (0) target = $region29
    $region28: #{tpu_custom_call.1} parent=1 // pred_region
      _
    $region29: #{tpu_custom_call.1} parent=1 // pred_fallthru
      _
    // Predicated region
    $region30: #{tpu_custom_call.1} parent=1 // pred_check
      _
    $region31: #{tpu_custom_call.1} parent=1 // pred_check_branch
      %41 = sbr.rel (0) target = $region33
    $region32: #{tpu_custom_call.1} parent=1 // pred_region
      _
    $region33: #{tpu_custom_call.1} parent=1 // pred_fallthru
      _
    // Predicated region
    $region34: #{tpu_custom_call.1} parent=1 // pred_check
      _
    $region35: #{tpu_custom_call.1} parent=1 // pred_check_branch
      %43 = sbr.rel (0) target = $region37
    $region36: #{tpu_custom_call.1} parent=1 // pred_region
      _
    $region37: #{tpu_custom_call.1} parent=1 // pred_fallthru
      _
    // Predicated region
    $region38: #{tpu_custom_call.1} parent=1 // pred_check
      _
    $region39: #{tpu_custom_call.1} parent=1 // pred_check_branch
      %45 = sbr.rel (0) target = $region41
    $region40: #{tpu_custom_call.1} parent=1 // pred_region
      _
    $region41: #{tpu_custom_call.1} parent=1 // pred_fallthru
      _
    // Predicated region
    $region42: #{tpu_custom_call.1} parent=1 // pred_check
      _
    $region43: #{tpu_custom_call.1} parent=1 // pred_check_branch
      %47 = sbr.rel (0) target = $region45
    $region44: #{tpu_custom_call.1} parent=1 // pred_region
      _
    $region45: #{tpu_custom_call.1} parent=1 // pred_fallthru
      _
    // Predicated region
    $region46: #{tpu_custom_call.1} parent=1 // pred_check
      _
    $region47: #{tpu_custom_call.1} parent=1 // pred_check_branch
      %49 = sbr.rel (0) target = $region49
    $region48: #{tpu_custom_call.1} parent=1 // pred_region
      _
    $region49: #{tpu_custom_call.1} parent=1 // pred_fallthru
      _
    // Predicated region
    $region50: #{tpu_custom_call.1} parent=1 // pred_check
      _
    $region51: #{tpu_custom_call.1} parent=1 // pred_check_branch
      %51 = sbr.rel (0) target = $region53
    $region52: #{tpu_custom_call.1} parent=1 // pred_region
      _
    $region53: #{tpu_custom_call.1} parent=1 // pred_fallthru
      _
    // Predicated region
    $region54: #{tpu_custom_call.1} parent=1 // pred_check
      _
    $region55: #{tpu_custom_call.1} parent=1 // pred_check_branch
      %53 = sbr.rel (0) target = $region57
    $region56: #{tpu_custom_call.1} parent=1 // pred_region
      _
    $region57: #{tpu_custom_call.1} parent=1 // pred_fallthru
      _
    // Predicated region
    $region58: #{tpu_custom_call.1} parent=1 // pred_check
      _
    $region59: #{tpu_custom_call.1} parent=1 // pred_check_branch
      %55 = sbr.rel (0) target = $region61
    $region60: #{tpu_custom_call.1} parent=1 // pred_region
      _
    $region61: #{tpu_custom_call.1} parent=1 // pred_fallthru
      _
    // Predicated region
    $region62: #{tpu_custom_call.1} parent=1 // pred_check
      _
    $region63: #{tpu_custom_call.1} parent=1 // pred_check_branch
      %57 = sbr.rel (0) target = $region65
    $region64: #{tpu_custom_call.1} parent=1 // pred_region
      %s59 = ssub.s32 16, 16
      %60 = vsyncadd [#allocation6], %s59
      %s62 = sshll.u32 %s15, 4
      %s63 = int_to_ptr.vmem [resolvable:$true] %s62
      %65 = dma.vmem_to_smem %s63, 16, [#allocation3], [#allocation6]
    $region65: #{tpu_custom_call.1} parent=1 // pred_fallthru
      _
    // Predicated region
    $region66: #{tpu_custom_call.1} parent=1 // pred_check
      _
    $region67: #{tpu_custom_call.1} parent=1 // pred_check_branch
      %67 = sbr.rel (0) target = $region69
    $region68: #{tpu_custom_call.1} parent=1 // pred_region
      %68 = dma.done [#allocation6], 16
    $region69: #{tpu_custom_call.1} parent=1 // pred_fallthru
      _
    %69 = sfence
    %v71 = vld [vmem:[%s0] sm:$0xff]
    %v72 = vld [vmem:[%s0 + $0x8] sm:$0xff]
    %v73 = vpack.c.bf16 %v71, %v71
    %v74 = vpack.c.bf16 %v72, %v72
    %v75 = vld [vmem:[%s9] sm:$0xff]
    %v76 = vld [vmem:[%s9 + $0x8] sm:$0xff]
    %v77 = vld [vmem:[%s9 + $0x10] sm:$0xf]
    %v78 = vld [vmem:[%s9 + $0x14] sm:$0xff]
    %v79 = vld [vmem:[%s9 + $0x1c] sm:$0xff]
    %v80 = vld [vmem:[%s9 + $0x24] sm:$0xf]
    %v81 = vld [vmem:[%s9 + $0x28] sm:$0xff]
    %v82 = vld [vmem:[%s9 + $0x30] sm:$0xff]
    %v83 = vld [vmem:[%s9 + $0x38] sm:$0xf]
    %v84 = vld [vmem:[%s9 + $0x3c] sm:$0xff]
    %v85 = vld [vmem:[%s9 + $0x44] sm:$0xff]
    %v86 = vld [vmem:[%s9 + $0x4c] sm:$0xf]
    %v87 = vld [vmem:[%s9 + $0x50] sm:$0xff]
    %v88 = vld [vmem:[%s9 + $0x58] sm:$0xff]
    %v89 = vld [vmem:[%s9 + $0x60] sm:$0xf]
    %v90 = vld [vmem:[%s9 + $0x64] sm:$0xff]
    %v91 = vld [vmem:[%s9 + $0x6c] sm:$0xff]
    %v92 = vld [vmem:[%s9 + $0x74] sm:$0xf]
    %v93 = vld [vmem:[%s9 + $0x78] sm:$0xff]
    %v94 = vld [vmem:[%s9 + $0x80] sm:$0xff]
    %v95 = vld [vmem:[%s9 + $0x88] sm:$0xf]
    %v96 = vld [vmem:[%s9 + $0x8c] sm:$0xff]
    %v97 = vld [vmem:[%s9 + $0x94] sm:$0xff]
    %v98 = vld [vmem:[%s9 + $0x9c] sm:$0xf]
    %v99 = vld [vmem:[%s9 + $0xa0] sm:$0xff]
    %v100 = vld [vmem:[%s9 + $0xa8] sm:$0xff]
    %v101 = vld [vmem:[%s9 + $0xb0] sm:$0xf]
    %v102 = vld [vmem:[%s9 + $0xb4] sm:$0xff]
    %v103 = vld [vmem:[%s9 + $0xbc] sm:$0xff]
    %v104 = vld [vmem:[%s9 + $0xc4] sm:$0xf]
    %v105 = vld [vmem:[%s9 + $0xc8] sm:$0xff]
    %v106 = vld [vmem:[%s9 + $0xd0] sm:$0xff]
    %v107 = vld [vmem:[%s9 + $0xd8] sm:$0xf]
    %v108 = vld [vmem:[%s9 + $0xdc] sm:$0xff]
    %v109 = vld [vmem:[%s9 + $0xe4] sm:$0xff]
    %v110 = vld [vmem:[%s9 + $0xec] sm:$0xf]
    %v111 = vld [vmem:[%s9 + $0xf0] sm:$0xff]
    %v112 = vld [vmem:[%s9 + $0xf8] sm:$0xff]
    %v113 = vld [vmem:[%s9 + $0x100] sm:$0xf]
    %v114 = vld [vmem:[%s9 + $0x104] sm:$0xff]
    %v115 = vld [vmem:[%s9 + $0x10c] sm:$0xff]
    %v116 = vld [vmem:[%s9 + $0x114] sm:$0xf]
    %v117 = vld [vmem:[%s9 + $0x118] sm:$0xff]
    %v118 = vld [vmem:[%s9 + $0x120] sm:$0xff]
    %v119 = vld [vmem:[%s9 + $0x128] sm:$0xf]
    %v120 = vld [vmem:[%s9 + $0x12c] sm:$0xff]
    %v121 = vld [vmem:[%s9 + $0x134] sm:$0xff]
    %v122 = vld [vmem:[%s9 + $0x13c] sm:$0xf]
    %v123 = vld [vmem:[%s9 + $0x140] sm:$0xff]
    %v124 = vld [vmem:[%s9 + $0x148] sm:$0xff]
    %v125 = vld [vmem:[%s9 + $0x150] sm:$0xf]
    %v126 = vld [vmem:[%s9 + $0x154] sm:$0xff]
    %v127 = vld [vmem:[%s9 + $0x15c] sm:$0xff]
    %v128 = vld [vmem:[%s9 + $0x164] sm:$0xf]
    %v129 = vld [vmem:[%s9 + $0x168] sm:$0xff]
    %v130 = vld [vmem:[%s9 + $0x170] sm:$0xff]
    %v131 = vld [vmem:[%s9 + $0x178] sm:$0xf]
    %v132 = vld [vmem:[%s9 + $0x17c] sm:$0xff]
    %v133 = vld [vmem:[%s9 + $0x184] sm:$0xff]
    %v134 = vld [vmem:[%s9 + $0x18c] sm:$0xf]
    %v135 = vld [vmem:[%s9 + $0x190] sm:$0xff]
    %v136 = vld [vmem:[%s9 + $0x198] sm:$0xff]
    %v137 = vld [vmem:[%s9 + $0x1a0] sm:$0xf]
    %v138 = vld [vmem:[%s9 + $0x1a4] sm:$0xff]
    %v139 = vld [vmem:[%s9 + $0x1ac] sm:$0xff]
    %v140 = vld [vmem:[%s9 + $0x1b4] sm:$0xf]
    %v141 = vld [vmem:[%s9 + $0x1b8] sm:$0xff]
    %v142 = vld [vmem:[%s9 + $0x1c0] sm:$0xff]
    %v143 = vld [vmem:[%s9 + $0x1c8] sm:$0xf]
    %v144 = vld [vmem:[%s9 + $0x1cc] sm:$0xff]
    %v145 = vld [vmem:[%s9 + $0x1d4] sm:$0xff]
    %v146 = vld [vmem:[%s9 + $0x1dc] sm:$0xf]
    %v147 = vld [vmem:[%s9 + $0x1e0] sm:$0xff]
    %v148 = vld [vmem:[%s9 + $0x1e8] sm:$0xff]
    %v149 = vld [vmem:[%s9 + $0x1f0] sm:$0xf]
    %v150 = vld [vmem:[%s9 + $0x1f4] sm:$0xff]
    %v151 = vld [vmem:[%s9 + $0x1fc] sm:$0xff]
    %v152 = vld [vmem:[%s9 + $0x204] sm:$0xf]
    %v153 = vld [vmem:[%s9 + $0x208] sm:$0xff]
    %v154 = vld [vmem:[%s9 + $0x210] sm:$0xff]
    %v155 = vld [vmem:[%s9 + $0x218] sm:$0xf]
    %v156 = vld [vmem:[%s9 + $0x21c] sm:$0xff]
    %v157 = vld [vmem:[%s9 + $0x224] sm:$0xff]
    %v158 = vld [vmem:[%s9 + $0x22c] sm:$0xf]
    %v159 = vld [vmem:[%s9 + $0x230] sm:$0xff]
    %v160 = vld [vmem:[%s9 + $0x238] sm:$0xff]
    %v161 = vld [vmem:[%s9 + $0x240] sm:$0xf]
    %v162 = vld [vmem:[%s9 + $0x244] sm:$0xff]
    %v163 = vld [vmem:[%s9 + $0x24c] sm:$0xff]
    %v164 = vld [vmem:[%s9 + $0x254] sm:$0xf]
    %v165 = vld [vmem:[%s9 + $0x258] sm:$0xff]
    %v166 = vld [vmem:[%s9 + $0x260] sm:$0xff]
    %v167 = vld [vmem:[%s9 + $0x268] sm:$0xf]
    %v168 = vld [vmem:[%s9 + $0x26c] sm:$0xff]
    %v169 = vld [vmem:[%s9 + $0x274] sm:$0xff]
    %v170 = vld [vmem:[%s9 + $0x27c] sm:$0xf]
    %v267 = vunpack.c.l.b16 %v75
    %v268 = vunpack.c.h.b16 %v75
    %v269 = vunpack.c.l.b16 %v76
    %v270 = vunpack.c.h.b16 %v76
    %v271 = vunpack.c.l.b16 %v77
    %v272 = vunpack.c.l.b16 %v78
    %v273 = vunpack.c.h.b16 %v78
    %v274 = vunpack.c.l.b16 %v79
    %v275 = vunpack.c.h.b16 %v79
    %v276 = vunpack.c.l.b16 %v80
    %v277 = vunpack.c.l.b16 %v81
    %v278 = vunpack.c.h.b16 %v81
    %v279 = vunpack.c.l.b16 %v82
    %v280 = vunpack.c.h.b16 %v82
    %v281 = vunpack.c.l.b16 %v83
    %v282 = vunpack.c.l.b16 %v84
    %v283 = vunpack.c.h.b16 %v84
    %v284 = vunpack.c.l.b16 %v85
    %v285 = vunpack.c.h.b16 %v85
    %v286 = vunpack.c.l.b16 %v86
    %v287 = vunpack.c.l.b16 %v87
    %v288 = vunpack.c.h.b16 %v87
    %v289 = vunpack.c.l.b16 %v88
    %v290 = vunpack.c.h.b16 %v88
    %v291 = vunpack.c.l.b16 %v89
    %v292 = vunpack.c.l.b16 %v90
    %v293 = vunpack.c.h.b16 %v90
    %v294 = vunpack.c.l.b16 %v91
    %v295 = vunpack.c.h.b16 %v91
    %v296 = vunpack.c.l.b16 %v92
    %v297 = vunpack.c.l.b16 %v93
    %v298 = vunpack.c.h.b16 %v93
    %v299 = vunpack.c.l.b16 %v94
    %v300 = vunpack.c.h.b16 %v94
    %v301 = vunpack.c.l.b16 %v95
    %v302 = vunpack.c.l.b16 %v96
    %v303 = vunpack.c.h.b16 %v96
    %v304 = vunpack.c.l.b16 %v97
    %v305 = vunpack.c.h.b16 %v97
    %v306 = vunpack.c.l.b16 %v98
    %v307 = vunpack.c.l.b16 %v99
    %v308 = vunpack.c.h.b16 %v99
    %v309 = vunpack.c.l.b16 %v100
    %v310 = vunpack.c.h.b16 %v100
    %v311 = vunpack.c.l.b16 %v101
    %v312 = vunpack.c.l.b16 %v102
    %v313 = vunpack.c.h.b16 %v102
    %v314 = vunpack.c.l.b16 %v103
    %v315 = vunpack.c.h.b16 %v103
    %v316 = vunpack.c.l.b16 %v104
    %v317 = vunpack.c.l.b16 %v105
    %v318 = vunpack.c.h.b16 %v105
    %v319 = vunpack.c.l.b16 %v106
    %v320 = vunpack.c.h.b16 %v106
    %v321 = vunpack.c.l.b16 %v107
    %v322 = vunpack.c.l.b16 %v108
    %v323 = vunpack.c.h.b16 %v108
    %v324 = vunpack.c.l.b16 %v109
    %v325 = vunpack.c.h.b16 %v109
    %v326 = vunpack.c.l.b16 %v110
    %v327 = vunpack.c.l.b16 %v111
    %v328 = vunpack.c.h.b16 %v111
    %v329 = vunpack.c.l.b16 %v112
    %v330 = vunpack.c.h.b16 %v112
    %v331 = vunpack.c.l.b16 %v113
    %v332 = vunpack.c.l.b16 %v114
    %v333 = vunpack.c.h.b16 %v114
    %v334 = vunpack.c.l.b16 %v115
    %v335 = vunpack.c.h.b16 %v115
    %v336 = vunpack.c.l.b16 %v116
    %v337 = vunpack.c.l.b16 %v117
    %v338 = vunpack.c.h.b16 %v117
    %v339 = vunpack.c.l.b16 %v118
    %v340 = vunpack.c.h.b16 %v118
    %v341 = vunpack.c.l.b16 %v119
    %v342 = vunpack.c.l.b16 %v120
    %v343 = vunpack.c.h.b16 %v120
    %v344 = vunpack.c.l.b16 %v121
    %v345 = vunpack.c.h.b16 %v121
    %v346 = vunpack.c.l.b16 %v122
    %v347 = vunpack.c.l.b16 %v123
    %v348 = vunpack.c.h.b16 %v123
    %v349 = vunpack.c.l.b16 %v124
    %v350 = vunpack.c.h.b16 %v124
    %v351 = vunpack.c.l.b16 %v125
    %v352 = vunpack.c.l.b16 %v126
    %v353 = vunpack.c.h.b16 %v126
    %v354 = vunpack.c.l.b16 %v127
    %v355 = vunpack.c.h.b16 %v127
    %v356 = vunpack.c.l.b16 %v128
    %v357 = vunpack.c.l.b16 %v129
    %v358 = vunpack.c.h.b16 %v129
    %v359 = vunpack.c.l.b16 %v130
    %v360 = vunpack.c.h.b16 %v130
    %v361 = vunpack.c.l.b16 %v131
    %v362 = vunpack.c.l.b16 %v132
    %v363 = vunpack.c.h.b16 %v132
    %v364 = vunpack.c.l.b16 %v133
    %v365 = vunpack.c.h.b16 %v133
    %v366 = vunpack.c.l.b16 %v134
    %v367 = vunpack.c.l.b16 %v135
    %v368 = vunpack.c.h.b16 %v135
    %v369 = vunpack.c.l.b16 %v136
    %v370 = vunpack.c.h.b16 %v136
    %v371 = vunpack.c.l.b16 %v137
    %v372 = vunpack.c.l.b16 %v138
    %v373 = vunpack.c.h.b16 %v138
    %v374 = vunpack.c.l.b16 %v139
    %v375 = vunpack.c.h.b16 %v139
    %v376 = vunpack.c.l.b16 %v140
    %v377 = vunpack.c.l.b16 %v141
    %v378 = vunpack.c.h.b16 %v141
    %v379 = vunpack.c.l.b16 %v142
    %v380 = vunpack.c.h.b16 %v142
    %v381 = vunpack.c.l.b16 %v143
    %v382 = vunpack.c.l.b16 %v144
    %v383 = vunpack.c.h.b16 %v144
    %v384 = vunpack.c.l.b16 %v145
    %v385 = vunpack.c.h.b16 %v145
    %v386 = vunpack.c.l.b16 %v146
    %v387 = vunpack.c.l.b16 %v147
    %v388 = vunpack.c.h.b16 %v147
    %v389 = vunpack.c.l.b16 %v148
    %v390 = vunpack.c.h.b16 %v148
    %v391 = vunpack.c.l.b16 %v149
    %v392 = vunpack.c.l.b16 %v150
    %v393 = vunpack.c.h.b16 %v150
    %v394 = vunpack.c.l.b16 %v151
    %v395 = vunpack.c.h.b16 %v151
    %v396 = vunpack.c.l.b16 %v152
    %v397 = vunpack.c.l.b16 %v153
    %v398 = vunpack.c.h.b16 %v153
    %v399 = vunpack.c.l.b16 %v154
    %v400 = vunpack.c.h.b16 %v154
    %v401 = vunpack.c.l.b16 %v155
    %v402 = vunpack.c.l.b16 %v156
    %v403 = vunpack.c.h.b16 %v156
    %v404 = vunpack.c.l.b16 %v157
    %v405 = vunpack.c.h.b16 %v157
    %v406 = vunpack.c.l.b16 %v158
    %v407 = vunpack.c.l.b16 %v159
    %v408 = vunpack.c.h.b16 %v159
    %v409 = vunpack.c.l.b16 %v160
    %v410 = vunpack.c.h.b16 %v160
    %v411 = vunpack.c.l.b16 %v161
    %v412 = vunpack.c.l.b16 %v162
    %v413 = vunpack.c.h.b16 %v162
    %v414 = vunpack.c.l.b16 %v163
    %v415 = vunpack.c.h.b16 %v163
    %v416 = vunpack.c.l.b16 %v164
    %v417 = vunpack.c.l.b16 %v165
    %v418 = vunpack.c.h.b16 %v165
    %v419 = vunpack.c.l.b16 %v166
    %v420 = vunpack.c.h.b16 %v166
    %v421 = vunpack.c.l.b16 %v167
    %v422 = vunpack.c.l.b16 %v168
    %v423 = vunpack.c.h.b16 %v168
    %v424 = vunpack.c.l.b16 %v169
    %v425 = vunpack.c.h.b16 %v169
    %v426 = vunpack.c.l.b16 %v170
    %v427 = vpack.c.b16 %v272, %v267
    %v428 = vpack.c.b16 %v273, %v268
    %v429 = vpack.c.b16 %v274, %v269
    %v430 = vpack.c.b16 %v275, %v270
    %v431 = vpack.c.b16 %v276, %v271
    %v432 = vpack.c.b16 %v282, %v277
    %v433 = vpack.c.b16 %v283, %v278
    %v434 = vpack.c.b16 %v284, %v279
    %v435 = vpack.c.b16 %v285, %v280
    %v436 = vpack.c.b16 %v286, %v281
    %v437 = vpack.c.b16 %v292, %v287
    %v438 = vpack.c.b16 %v293, %v288
    %v439 = vpack.c.b16 %v294, %v289
    %v440 = vpack.c.b16 %v295, %v290
    %v441 = vpack.c.b16 %v296, %v291
    %v442 = vpack.c.b16 %v302, %v297
    %v443 = vpack.c.b16 %v303, %v298
    %v444 = vpack.c.b16 %v304, %v299
    %v445 = vpack.c.b16 %v305, %v300
    %v446 = vpack.c.b16 %v306, %v301
    %v447 = vpack.c.b16 %v312, %v307
    %v448 = vpack.c.b16 %v313, %v308
    %v449 = vpack.c.b16 %v314, %v309
    %v450 = vpack.c.b16 %v315, %v310
    %v451 = vpack.c.b16 %v316, %v311
    %v452 = vpack.c.b16 %v322, %v317
    %v453 = vpack.c.b16 %v323, %v318
    %v454 = vpack.c.b16 %v324, %v319
    %v455 = vpack.c.b16 %v325, %v320
    %v456 = vpack.c.b16 %v326, %v321
    %v457 = vpack.c.b16 %v332, %v327
    %v458 = vpack.c.b16 %v333, %v328
    %v459 = vpack.c.b16 %v334, %v329
    %v460 = vpack.c.b16 %v335, %v330
    %v461 = vpack.c.b16 %v336, %v331
    %v462 = vpack.c.b16 %v342, %v337
    %v463 = vpack.c.b16 %v343, %v338
    %v464 = vpack.c.b16 %v344, %v339
    %v465 = vpack.c.b16 %v345, %v340
    %v466 = vpack.c.b16 %v346, %v341
    %v467 = vpack.c.b16 %v352, %v347
    %v468 = vpack.c.b16 %v353, %v348
    %v469 = vpack.c.b16 %v354, %v349
    %v470 = vpack.c.b16 %v355, %v350
    %v471 = vpack.c.b16 %v356, %v351
    %v472 = vpack.c.b16 %v362, %v357
    %v473 = vpack.c.b16 %v363, %v358
    %v474 = vpack.c.b16 %v364, %v359
    %v475 = vpack.c.b16 %v365, %v360
    %v476 = vpack.c.b16 %v366, %v361
    %v477 = vpack.c.b16 %v372, %v367
    %v478 = vpack.c.b16 %v373, %v368
    %v479 = vpack.c.b16 %v374, %v369
    %v480 = vpack.c.b16 %v375, %v370
    %v481 = vpack.c.b16 %v376, %v371
    %v482 = vpack.c.b16 %v382, %v377
    %v483 = vpack.c.b16 %v383, %v378
    %v484 = vpack.c.b16 %v384, %v379
    %v485 = vpack.c.b16 %v385, %v380
    %v486 = vpack.c.b16 %v386, %v381
    %v487 = vpack.c.b16 %v392, %v387
    %v488 = vpack.c.b16 %v393, %v388
    %v489 = vpack.c.b16 %v394, %v389
    %v490 = vpack.c.b16 %v395, %v390
    %v491 = vpack.c.b16 %v396, %v391
    %v492 = vpack.c.b16 %v402, %v397
    %v493 = vpack.c.b16 %v403, %v398
    %v494 = vpack.c.b16 %v404, %v399
    %v495 = vpack.c.b16 %v405, %v400
    %v496 = vpack.c.b16 %v406, %v401
    %v497 = vpack.c.b16 %v412, %v407
    %v498 = vpack.c.b16 %v413, %v408
    %v499 = vpack.c.b16 %v414, %v409
    %v500 = vpack.c.b16 %v415, %v410
    %v501 = vpack.c.b16 %v416, %v411
    %v502 = vpack.c.b16 %v422, %v417
    %v503 = vpack.c.b16 %v423, %v418
    %v504 = vpack.c.b16 %v424, %v419
    %v505 = vpack.c.b16 %v425, %v420
    %v506 = vpack.c.b16 %v426, %v421
    %587 = vmatprep.subr.bf16.mxu0 %v463
    %588 = vmatpush1.bf16.msra.mxu0 %v462
    %589 = vmatprep.subr.bf16.mxu0 %v458
    %590 = vmatpush1.bf16.msra.mxu0 %v457
    %591 = vmatprep.subr.bf16.mxu0 %v453
    %592 = vmatpush1.bf16.msra.mxu0 %v452
    %593 = vmatprep.subr.bf16.mxu0 %v448
    %594 = vmatpush1.bf16.msra.mxu0 %v447
    %595 = vmatprep.subr.bf16.mxu0 %v443
    %596 = vmatpush1.bf16.msra.mxu0 %v442
    %597 = vmatprep.subr.bf16.mxu0 %v438
    %598 = vmatpush1.bf16.msra.mxu0 %v437
    %599 = vmatprep.subr.bf16.mxu0 %v433
    %600 = vmatpush1.bf16.msra.mxu0 %v432
    %601 = vmatprep.subr.bf16.mxu0 %v428
    %602 = vmatpush1.bf16.msra.mxu0 %v427
    %603 = vmatprep.subr.bf16.mxu0 %v503
    %604 = vmatpush2.bf16.msra.mxu0 %v502
    %605 = vmatprep.subr.bf16.mxu0 %v498
    %606 = vmatpush2.bf16.msra.mxu0 %v497
    %607 = vmatprep.subr.bf16.mxu0 %v493
    %608 = vmatpush2.bf16.msra.mxu0 %v492
    %609 = vmatprep.subr.bf16.mxu0 %v488
    %610 = vmatpush2.bf16.msra.mxu0 %v487
    %611 = vmatprep.subr.bf16.mxu0 %v483
    %612 = vmatpush2.bf16.msra.mxu0 %v482
    %613 = vmatprep.subr.bf16.mxu0 %v478
    %614 = vmatpush2.bf16.msra.mxu0 %v477
    %615 = vmatprep.subr.bf16.mxu0 %v473
    %616 = vmatpush2.bf16.msra.mxu0 %v472
    %617 = vmatprep.subr.bf16.mxu0 %v468
    %618 = vmatpush2.bf16.msra.mxu0 %v467
    %619 = vmatprep.mubr.bf16.mxu0 %v74
    %620 = vmatmul.mubr.bf16.gmra.mxu0 %v73
    %v621 = vpop.f32.mrf.mxu0
    %v622 = vadd.f32 0.0, %v621
    %v623 = vpop.f32.mrf.mxu0
    %v624 = vadd.f32 0.0, %v623
    %v625 = vpop.f32.mrf.mxu0
    %v626 = vpop.f32.mrf.mxu0
    %627 = vdwg.mxu0
    %628 = vmatprep.subr.bf16.mxu0 %v465
    %629 = vmatpush1.bf16.msra.mxu0 %v464
    %630 = vmatprep.subr.bf16.mxu0 %v460
    %631 = vmatpush1.bf16.msra.mxu0 %v459
    %632 = vmatprep.subr.bf16.mxu0 %v455
    %633 = vmatpush1.bf16.msra.mxu0 %v454
    %634 = vmatprep.subr.bf16.mxu0 %v450
    %635 = vmatpush1.bf16.msra.mxu0 %v449
    %636 = vmatprep.subr.bf16.mxu0 %v445
    %637 = vmatpush1.bf16.msra.mxu0 %v444
    %638 = vmatprep.subr.bf16.mxu0 %v440
    %639 = vmatpush1.bf16.msra.mxu0 %v439
    %640 = vmatprep.subr.bf16.mxu0 %v435
    %641 = vmatpush1.bf16.msra.mxu0 %v434
    %642 = vmatprep.subr.bf16.mxu0 %v430
    %643 = vmatpush1.bf16.msra.mxu0 %v429
    %644 = vmatprep.subr.bf16.mxu0 %v505
    %645 = vmatpush2.bf16.msra.mxu0 %v504
    %646 = vmatprep.subr.bf16.mxu0 %v500
    %647 = vmatpush2.bf16.msra.mxu0 %v499
    %648 = vmatprep.subr.bf16.mxu0 %v495
    %649 = vmatpush2.bf16.msra.mxu0 %v494
    %650 = vmatprep.subr.bf16.mxu0 %v490
    %651 = vmatpush2.bf16.msra.mxu0 %v489
    %652 = vmatprep.subr.bf16.mxu0 %v485
    %653 = vmatpush2.bf16.msra.mxu0 %v484
    %654 = vmatprep.subr.bf16.mxu0 %v480
    %655 = vmatpush2.bf16.msra.mxu0 %v479
    %656 = vmatprep.subr.bf16.mxu0 %v475
    %657 = vmatpush2.bf16.msra.mxu0 %v474
    %658 = vmatprep.subr.bf16.mxu0 %v470
    %659 = vmatpush2.bf16.msra.mxu0 %v469
    %660 = vmatprep.mubr.bf16.mxu0 %v74
    %661 = vmatmul.mubr.bf16.gmra.mxu0 %v73
    %v662 = vpop.f32.mrf.mxu0
    %v663 = vadd.f32 0.0, %v662
    %v664 = vpop.f32.mrf.mxu0
    %v665 = vadd.f32 0.0, %v664
    %v666 = vpop.f32.mrf.mxu0
    %v667 = vpop.f32.mrf.mxu0
    %668 = vdwg.mxu0
    %669 = vmatprep.subr.bf16.mxu0 0
    %670 = vmatpush1.bf16.msra.mxu0 %v466
    %671 = vmatprep.subr.bf16.mxu0 0
    %672 = vmatpush1.bf16.msra.mxu0 %v461
    %673 = vmatprep.subr.bf16.mxu0 0
    %674 = vmatpush1.bf16.msra.mxu0 %v456
    %675 = vmatprep.subr.bf16.mxu0 0
    %676 = vmatpush1.bf16.msra.mxu0 %v451
    %677 = vmatprep.subr.bf16.mxu0 0
    %678 = vmatpush1.bf16.msra.mxu0 %v446
    %679 = vmatprep.subr.bf16.mxu0 0
    %680 = vmatpush1.bf16.msra.mxu0 %v441
    %681 = vmatprep.subr.bf16.mxu0 0
    %682 = vmatpush1.bf16.msra.mxu0 %v436
    %683 = vmatprep.subr.bf16.mxu0 0
    %684 = vmatpush1.bf16.msra.mxu0 %v431
    %685 = vmatprep.subr.bf16.mxu0 0
    %686 = vmatpush2.bf16.msra.mxu0 %v506
    %687 = vmatprep.subr.bf16.mxu0 0
    %688 = vmatpush2.bf16.msra.mxu0 %v501
    %689 = vmatprep.subr.bf16.mxu0 0
    %690 = vmatpush2.bf16.msra.mxu0 %v496
    %691 = vmatprep.subr.bf16.mxu0 0
    %692 = vmatpush2.bf16.msra.mxu0 %v491
    %693 = vmatprep.subr.bf16.mxu0 0
    %694 = vmatpush2.bf16.msra.mxu0 %v486
    %695 = vmatprep.subr.bf16.mxu0 0
    %696 = vmatpush2.bf16.msra.mxu0 %v481
    %697 = vmatprep.subr.bf16.mxu0 0
    %698 = vmatpush2.bf16.msra.mxu0 %v476
    %699 = vmatprep.subr.bf16.mxu0 0
    %700 = vmatpush2.bf16.msra.mxu0 %v471
    %701 = vmatprep.mubr.bf16.mxu0 %v74
    %702 = vmatmul.mubr.bf16.gmra.mxu0 %v73
    %v703 = vpop.f32.mrf.mxu0
    %v704 = vadd.f32 0.0, %v703
    %v705 = vpop.f32.mrf.mxu0
    %v706 = vpop.f32.mrf.mxu0
    %v707 = vpop.f32.mrf.mxu0
    %708 = vdwg.mxu0
    %710 = vrot.lane.b32.xlu0 %v622, 64
    %v711 = vpop.permute.xlu0 %710
    %714 = vrot.lane.b32.xlu0 %v624, 64
    %v715 = vpop.permute.xlu0 %714
    %718 = vrot.lane.b32.xlu0 %v663, 64
    %v719 = vpop.permute.xlu0 %718
    %722 = vrot.lane.b32.xlu0 %v665, 64
    %v723 = vpop.permute.xlu0 %722
    %v725 = vld [vmem:[%s1] sm:$0xf]
    %v726 = vld [vmem:[%s1 + $0x4] sm:$0xf]
    %v727 = vld [vmem:[%s1 + $0x8] sm:$0xf]
    %v728 = vld [vmem:[%s1 + $0xc] sm:$0xf]
    %v729 = vpack.c.bf16 %v711, %v622
    %v730 = vpack.c.bf16 %v715, %v624
    %v731 = vpack.c.bf16 %v719, %v663
    %v732 = vpack.c.bf16 %v723, %v665
    %v733 = vpack.c.bf16 %v704, %v704
    %v734 = vld [vmem:[%s2] sm:$0xff]
    %v735 = vld [vmem:[%s2 + $0x8] sm:$0xff]
    %v736 = vld [vmem:[%s2 + $0x10] sm:$0xff]
    %v737 = vld [vmem:[%s2 + $0x18] sm:$0xff]
    %739 = vset.pattern.permute.xlu0 0
    %740 = vperm.xlu0 %739, %v734
    %v741 = vpop.permute.xlu0 %740
    %744 = vset.pattern.permute.xlu0 0
    %745 = vperm.xlu0 %744, %v735
    %v746 = vpop.permute.xlu0 %745
    %749 = vset.pattern.permute.xlu0 0
    %750 = vperm.xlu0 %749, %v736
    %v751 = vpop.permute.xlu0 %750
    %754 = vset.pattern.permute.xlu0 0
    %755 = vperm.xlu0 %754, %v737
    %v756 = vpop.permute.xlu0 %755
    %v762 = vunpack.c.l.b16 %v725
    %v763 = vunpack.c.l.b16 %v726
    %v764 = vunpack.c.l.b16 %v727
    %v765 = vunpack.c.l.b16 %v728
    %v766 = vpack.c.b16 %v763, %v762
    %v767 = vpack.c.b16 %v765, %v764
    %vm768 = vcmask 588800
    %v770 = vsel %vm768, %v766, 0
    %v773 = vsel %vm768, %v767, 0
    %vm775 = vcmask 1043456
    %v777 = vsel %vm775, %v733, 0
    %779 = vmatprep.subr.bf16.mxu0 0
    %780 = vmatpush1.bf16.msra.mxu0 0
    %781 = vmatprep.subr.bf16.mxu0 0
    %782 = vmatpush1.bf16.msra.mxu0 0
    %783 = vmatprep.subr.bf16.mxu0 0
    %784 = vmatpush1.bf16.msra.mxu0 0
    %785 = vmatprep.subr.bf16.mxu0 0
    %786 = vmatpush1.bf16.msra.mxu0 %v777
    %787 = vmatprep.subr.bf16.mxu0 0
    %788 = vmatpush1.bf16.msra.mxu0 %v732
    %789 = vmatprep.subr.bf16.mxu0 0
    %790 = vmatpush1.bf16.msra.mxu0 %v731
    %791 = vmatprep.subr.bf16.mxu0 0
    %792 = vmatpush1.bf16.msra.mxu0 %v730
    %793 = vmatprep.subr.bf16.mxu0 0
    %794 = vmatpush1.bf16.msra.mxu0 %v729
    %795 = vmatprep.subr.bf16.mxu0 0
    %796 = vmatpush2.bf16.msra.mxu0 0
    %797 = vmatprep.subr.bf16.mxu0 0
    %798 = vmatpush2.bf16.msra.mxu0 0
    %799 = vmatprep.subr.bf16.mxu0 0
    %800 = vmatpush2.bf16.msra.mxu0 0
    %801 = vmatprep.subr.bf16.mxu0 0
    %802 = vmatpush2.bf16.msra.mxu0 0
    %803 = vmatprep.subr.bf16.mxu0 0
    %804 = vmatpush2.bf16.msra.mxu0 0
    %805 = vmatprep.subr.bf16.mxu0 0
    %806 = vmatpush2.bf16.msra.mxu0 0
    %807 = vmatprep.subr.bf16.mxu0 0
    %808 = vmatpush2.bf16.msra.mxu0 0
    %809 = vmatprep.subr.bf16.mxu0 0
    %810 = vmatpush2.bf16.msra.mxu0 0
    %811 = vmatprep.mubr.bf16.mxu0 0
    %812 = vmatmul.mubr.bf16.gmra.mxu0 %v770
    %v813 = vpop.f32.mrf.mxu0
    %v814 = vadd.f32 %v741, %v813
    %v815 = vpop.f32.mrf.mxu0
    %v816 = vpop.f32.mrf.mxu0
    %v817 = vadd.f32 %v746, %v816
    %v818 = vpop.f32.mrf.mxu0
    %819 = vmatprep.mubr.bf16.mxu0 0
    %820 = vmatmul.mubr.bf16.gmra.mxu0 %v773
    %v821 = vpop.f32.mrf.mxu0
    %v822 = vadd.f32 %v751, %v821
    %v823 = vpop.f32.mrf.mxu0
    %v824 = vpop.f32.mrf.mxu0
    %v825 = vadd.f32 %v756, %v824
    %v826 = vpop.f32.mrf.mxu0
    %827 = vdwg.mxu0
    %v828 = vmax.f32 %v814, 0.0
    %v829 = vmax.f32 %v817, 0.0
    %v830 = vmax.f32 %v822, 0.0
    %v831 = vmax.f32 %v825, 0.0
    %v832 = vpack.c.bf16 %v829, %v828
    %v833 = vpack.c.bf16 %v831, %v830
    %v834 = vld [vmem:[%s10] sm:$0xff]
    %v835 = vld [vmem:[%s10 + $0x8] sm:$0xff]
    %v836 = vld [vmem:[%s10 + $0x10] sm:$0xff]
    %v837 = vld [vmem:[%s10 + $0x18] sm:$0xff]
    %v838 = vld [vmem:[%s10 + $0x20] sm:$0xff]
    %v839 = vld [vmem:[%s10 + $0x28] sm:$0xff]
    %v840 = vld [vmem:[%s10 + $0x30] sm:$0xff]
    %v841 = vld [vmem:[%s10 + $0x38] sm:$0xff]
    %v850 = vunpack.c.l.b16 %v834
    %v851 = vunpack.c.h.b16 %v834
    %v852 = vunpack.c.l.b16 %v835
    %v853 = vunpack.c.h.b16 %v835
    %v854 = vunpack.c.l.b16 %v836
    %v855 = vunpack.c.h.b16 %v836
    %v856 = vunpack.c.l.b16 %v837
    %v857 = vunpack.c.h.b16 %v837
    %v858 = vunpack.c.l.b16 %v838
    %v859 = vunpack.c.h.b16 %v838
    %v860 = vunpack.c.l.b16 %v839
    %v861 = vunpack.c.h.b16 %v839
    %v862 = vunpack.c.l.b16 %v840
    %v863 = vunpack.c.h.b16 %v840
    %v864 = vunpack.c.l.b16 %v841
    %v865 = vunpack.c.h.b16 %v841
    %v866 = vpack.c.b16 %v852, %v850
    %v867 = vpack.c.b16 %v853, %v851
    %v868 = vpack.c.b16 %v856, %v854
    %v869 = vpack.c.b16 %v857, %v855
    %v870 = vpack.c.b16 %v860, %v858
    %v871 = vpack.c.b16 %v861, %v859
    %v872 = vpack.c.b16 %v864, %v862
    %v873 = vpack.c.b16 %v865, %v863
    %vm882 = vcmask 523264
    %v884 = vsel %vm882, %v832, 0
    %v887 = vsel %vm882, %v833, 0
    %889 = vmatprep.subr.bf16.mxu0 0
    %890 = vmatpush1.bf16.msra.mxu0 0
    %891 = vmatprep.subr.bf16.mxu0 0
    %892 = vmatpush1.bf16.msra.mxu0 0
    %893 = vmatprep.subr.bf16.mxu0 0
    %894 = vmatpush1.bf16.msra.mxu0 0
    %895 = vmatprep.subr.bf16.mxu0 0
    %896 = vmatpush1.bf16.msra.mxu0 0
    %897 = vmatprep.subr.bf16.mxu0 %v873
    %898 = vmatpush1.bf16.msra.mxu0 %v872
    %899 = vmatprep.subr.bf16.mxu0 %v871
    %900 = vmatpush1.bf16.msra.mxu0 %v870
    %901 = vmatprep.subr.bf16.mxu0 %v869
    %902 = vmatpush1.bf16.msra.mxu0 %v868
    %903 = vmatprep.subr.bf16.mxu0 %v867
    %904 = vmatpush1.bf16.msra.mxu0 %v866
    %905 = vmatprep.subr.bf16.mxu0 0
    %906 = vmatpush2.bf16.msra.mxu0 0
    %907 = vmatprep.subr.bf16.mxu0 0
    %908 = vmatpush2.bf16.msra.mxu0 0
    %909 = vmatprep.subr.bf16.mxu0 0
    %910 = vmatpush2.bf16.msra.mxu0 0
    %911 = vmatprep.subr.bf16.mxu0 0
    %912 = vmatpush2.bf16.msra.mxu0 0
    %913 = vmatprep.subr.bf16.mxu0 0
    %914 = vmatpush2.bf16.msra.mxu0 0
    %915 = vmatprep.subr.bf16.mxu0 0
    %916 = vmatpush2.bf16.msra.mxu0 0
    %917 = vmatprep.subr.bf16.mxu0 0
    %918 = vmatpush2.bf16.msra.mxu0 0
    %919 = vmatprep.subr.bf16.mxu0 0
    %920 = vmatpush2.bf16.msra.mxu0 0
    %921 = vmatprep.mubr.bf16.mxu0 0
    %922 = vmatmul.mubr.bf16.gmra.mxu0 %v884
    %v923 = vpop.f32.mrf.mxu0
    %v924 = vadd.f32 0.0, %v923
    %v925 = vpop.f32.mrf.mxu0
    %v926 = vadd.f32 0.0, %v925
    %v927 = vpop.f32.mrf.mxu0
    %v928 = vadd.f32 0.0, %v927
    %v929 = vpop.f32.mrf.mxu0
    %v930 = vadd.f32 0.0, %v929
    %931 = vmatprep.mubr.bf16.mxu0 0
    %932 = vmatmul.mubr.bf16.gmra.mxu0 %v887
    %v933 = vpop.f32.mrf.mxu0
    %v934 = vadd.f32 0.0, %v933
    %v935 = vpop.f32.mrf.mxu0
    %v936 = vadd.f32 0.0, %v935
    %v937 = vpop.f32.mrf.mxu0
    %v938 = vadd.f32 0.0, %v937
    %v939 = vpop.f32.mrf.mxu0
    %v940 = vadd.f32 0.0, %v939
    %941 = vdwg.mxu0
    %946 = vrot.lane.b32.xlu0 %v924, 112
    %v947 = vpop.permute.xlu0 %946
    %948 = vrot.lane.b32.xlu0 %v928, 112
    %v949 = vpop.permute.xlu0 %948
    %950 = vrot.lane.b32.xlu0 %v934, 112
    %v951 = vpop.permute.xlu0 %950
    %952 = vrot.lane.b32.xlu0 %v938, 112
    %v953 = vpop.permute.xlu0 %952
    %958 = vrot.lane.b32.xlu0 %v924, 96
    %v959 = vpop.permute.xlu0 %958
    %960 = vrot.lane.b32.xlu0 %v928, 96
    %v961 = vpop.permute.xlu0 %960
    %962 = vrot.lane.b32.xlu0 %v934, 96
    %v963 = vpop.permute.xlu0 %962
    %964 = vrot.lane.b32.xlu0 %v938, 96
    %v965 = vpop.permute.xlu0 %964
    %970 = vrot.lane.b32.xlu0 %v924, 80
    %v971 = vpop.permute.xlu0 %970
    %972 = vrot.lane.b32.xlu0 %v928, 80
    %v973 = vpop.permute.xlu0 %972
    %974 = vrot.lane.b32.xlu0 %v934, 80
    %v975 = vpop.permute.xlu0 %974
    %976 = vrot.lane.b32.xlu0 %v938, 80
    %v977 = vpop.permute.xlu0 %976
    %982 = vrot.lane.b32.xlu0 %v924, 64
    %v983 = vpop.permute.xlu0 %982
    %984 = vrot.lane.b32.xlu0 %v928, 64
    %v985 = vpop.permute.xlu0 %984
    %986 = vrot.lane.b32.xlu0 %v934, 64
    %v987 = vpop.permute.xlu0 %986
    %988 = vrot.lane.b32.xlu0 %v938, 64
    %v989 = vpop.permute.xlu0 %988
    %994 = vrot.lane.b32.xlu0 %v924, 48
    %v995 = vpop.permute.xlu0 %994
    %996 = vrot.lane.b32.xlu0 %v928, 48
    %v997 = vpop.permute.xlu0 %996
    %998 = vrot.lane.b32.xlu0 %v934, 48
    %v999 = vpop.permute.xlu0 %998
    %1000 = vrot.lane.b32.xlu0 %v938, 48
    %v1001 = vpop.permute.xlu0 %1000
    %1006 = vrot.lane.b32.xlu0 %v924, 32
    %v1007 = vpop.permute.xlu0 %1006
    %1008 = vrot.lane.b32.xlu0 %v928, 32
    %v1009 = vpop.permute.xlu0 %1008
    %1010 = vrot.lane.b32.xlu0 %v934, 32
    %v1011 = vpop.permute.xlu0 %1010
    %1012 = vrot.lane.b32.xlu0 %v938, 32
    %v1013 = vpop.permute.xlu0 %1012
    %1018 = vrot.lane.b32.xlu0 %v924, 16
    %v1019 = vpop.permute.xlu0 %1018
    %1020 = vrot.lane.b32.xlu0 %v928, 16
    %v1021 = vpop.permute.xlu0 %1020
    %1022 = vrot.lane.b32.xlu0 %v934, 16
    %v1023 = vpop.permute.xlu0 %1022
    %1024 = vrot.lane.b32.xlu0 %v938, 16
    %v1025 = vpop.permute.xlu0 %1024
    %v1030 = vld [vmem:[%s3] sm:$0xff]
    %v1031 = vld [vmem:[%s3 + $0x8] sm:$0xf]
    %v1032 = vld [vmem:[%s3 + $0xc] sm:$0xff]
    %v1033 = vld [vmem:[%s3 + $0x14] sm:$0xf]
    %v1034 = vld [vmem:[%s3 + $0x18] sm:$0xff]
    %v1035 = vld [vmem:[%s3 + $0x20] sm:$0xf]
    %v1036 = vld [vmem:[%s3 + $0x24] sm:$0xff]
    %v1037 = vld [vmem:[%s3 + $0x2c] sm:$0xf]
    %v1038 = vld [vmem:[%s3 + $0x30] sm:$0xff]
    %v1039 = vld [vmem:[%s3 + $0x38] sm:$0xf]
    %v1040 = vld [vmem:[%s3 + $0x3c] sm:$0xff]
    %v1041 = vld [vmem:[%s3 + $0x44] sm:$0xf]
    %v1042 = vld [vmem:[%s3 + $0x48] sm:$0xff]
    %v1043 = vld [vmem:[%s3 + $0x50] sm:$0xf]
    %v1044 = vld [vmem:[%s3 + $0x54] sm:$0xff]
    %v1045 = vld [vmem:[%s3 + $0x5c] sm:$0xf]
    %v1046 = vpack.c.bf16 %v928, %v924
    %v1047 = vpack.c.bf16 %v938, %v934
    %v1048 = vpack.c.bf16 %v949, %v947
    %v1049 = vpack.c.bf16 %v953, %v951
    %v1050 = vpack.c.bf16 %v961, %v959
    %v1051 = vpack.c.bf16 %v965, %v963
    %v1052 = vpack.c.bf16 %v973, %v971
    %v1053 = vpack.c.bf16 %v977, %v975
    %v1054 = vpack.c.bf16 %v985, %v983
    %v1055 = vpack.c.bf16 %v989, %v987
    %v1056 = vpack.c.bf16 %v997, %v995
    %v1057 = vpack.c.bf16 %v1001, %v999
    %v1058 = vpack.c.bf16 %v1009, %v1007
    %v1059 = vpack.c.bf16 %v1013, %v1011
    %v1060 = vpack.c.bf16 %v1021, %v1019
    %v1061 = vpack.c.bf16 %v1025, %v1023
    %v1062 = vpack.c.bf16 %v930, %v926
    %v1063 = vpack.c.bf16 %v940, %v936
    %v1064 = vld [vmem:[%s4] sm:$0xff]
    %v1065 = vld [vmem:[%s4 + $0x8] sm:$0xff]
    %v1066 = vld [vmem:[%s4 + $0x10] sm:$0xff]
    %v1067 = vld [vmem:[%s4 + $0x18] sm:$0xff]
    %v1068 = vld [vmem:[%s4 + $0x20] sm:$0xff]
    %v1069 = vld [vmem:[%s4 + $0x28] sm:$0xff]
    %v1070 = vld [vmem:[%s4 + $0x30] sm:$0xff]
    %v1071 = vld [vmem:[%s4 + $0x38] sm:$0xff]
    %1073 = vset.pattern.permute.xlu0 0
    %1074 = vperm.xlu0 %1073, %v1064
    %v1075 = vpop.permute.xlu0 %1074
    %1078 = vset.pattern.permute.xlu0 0
    %1079 = vperm.xlu0 %1078, %v1065
    %v1080 = vpop.permute.xlu0 %1079
    %1083 = vset.pattern.permute.xlu0 0
    %1084 = vperm.xlu0 %1083, %v1066
    %v1085 = vpop.permute.xlu0 %1084
    %1088 = vset.pattern.permute.xlu0 0
    %1089 = vperm.xlu0 %1088, %v1067
    %v1090 = vpop.permute.xlu0 %1089
    %1093 = vset.pattern.permute.xlu0 0
    %1094 = vperm.xlu0 %1093, %v1068
    %v1095 = vpop.permute.xlu0 %1094
    %1098 = vset.pattern.permute.xlu0 0
    %1099 = vperm.xlu0 %1098, %v1069
    %v1100 = vpop.permute.xlu0 %1099
    %1103 = vset.pattern.permute.xlu0 0
    %1104 = vperm.xlu0 %1103, %v1070
    %v1105 = vpop.permute.xlu0 %1104
    %1108 = vset.pattern.permute.xlu0 0
    %1109 = vperm.xlu0 %1108, %v1071
    %v1110 = vpop.permute.xlu0 %1109
    %v1128 = vunpack.c.l.b16 %v1030
    %v1129 = vunpack.c.h.b16 %v1030
    %v1130 = vunpack.c.l.b16 %v1031
    %v1131 = vunpack.c.l.b16 %v1032
    %v1132 = vunpack.c.h.b16 %v1032
    %v1133 = vunpack.c.l.b16 %v1033
    %v1134 = vunpack.c.l.b16 %v1034
    %v1135 = vunpack.c.h.b16 %v1034
    %v1136 = vunpack.c.l.b16 %v1035
    %v1137 = vunpack.c.l.b16 %v1036
    %v1138 = vunpack.c.h.b16 %v1036
    %v1139 = vunpack.c.l.b16 %v1037
    %v1140 = vunpack.c.l.b16 %v1038
    %v1141 = vunpack.c.h.b16 %v1038
    %v1142 = vunpack.c.l.b16 %v1039
    %v1143 = vunpack.c.l.b16 %v1040
    %v1144 = vunpack.c.h.b16 %v1040
    %v1145 = vunpack.c.l.b16 %v1041
    %v1146 = vunpack.c.l.b16 %v1042
    %v1147 = vunpack.c.h.b16 %v1042
    %v1148 = vunpack.c.l.b16 %v1043
    %v1149 = vunpack.c.l.b16 %v1044
    %v1150 = vunpack.c.h.b16 %v1044
    %v1151 = vunpack.c.l.b16 %v1045
    %v1152 = vpack.c.b16 %v1131, %v1128
    %v1153 = vpack.c.b16 %v1132, %v1129
    %v1154 = vpack.c.b16 %v1133, %v1130
    %v1155 = vpack.c.b16 %v1137, %v1134
    %v1156 = vpack.c.b16 %v1138, %v1135
    %v1157 = vpack.c.b16 %v1139, %v1136
    %v1158 = vpack.c.b16 %v1143, %v1140
    %v1159 = vpack.c.b16 %v1144, %v1141
    %v1160 = vpack.c.b16 %v1145, %v1142
    %v1161 = vpack.c.b16 %v1149, %v1146
    %v1162 = vpack.c.b16 %v1150, %v1147
    %v1163 = vpack.c.b16 %v1151, %v1148
    %vm1172 = vcmask 261120
    %v1174 = vsel %vm1172, %v1154, 0
    %v1177 = vsel %vm1172, %v1157, 0
    %v1180 = vsel %vm1172, %v1160, 0
    %v1183 = vsel %vm1172, %v1163, 0
    %1185 = vmatprep.subr.bf16.mxu0 0
    %1186 = vmatpush1.bf16.msra.mxu0 %v1053
    %1187 = vmatprep.subr.bf16.mxu0 0
    %1188 = vmatpush1.bf16.msra.mxu0 %v1052
    %1189 = vmatprep.subr.bf16.mxu0 0
    %1190 = vmatpush1.bf16.msra.mxu0 %v1051
    %1191 = vmatprep.subr.bf16.mxu0 0
    %1192 = vmatpush1.bf16.msra.mxu0 %v1050
    %1193 = vmatprep.subr.bf16.mxu0 0
    %1194 = vmatpush1.bf16.msra.mxu0 %v1049
    %1195 = vmatprep.subr.bf16.mxu0 0
    %1196 = vmatpush1.bf16.msra.mxu0 %v1048
    %1197 = vmatprep.subr.bf16.mxu0 0
    %1198 = vmatpush1.bf16.msra.mxu0 %v1047
    %1199 = vmatprep.subr.bf16.mxu0 0
    %1200 = vmatpush1.bf16.msra.mxu0 %v1046
    %1201 = vmatprep.subr.bf16.mxu0 0
    %1202 = vmatpush2.bf16.msra.mxu0 %v1061
    %1203 = vmatprep.subr.bf16.mxu0 0
    %1204 = vmatpush2.bf16.msra.mxu0 %v1060
    %1205 = vmatprep.subr.bf16.mxu0 0
    %1206 = vmatpush2.bf16.msra.mxu0 %v1059
    %1207 = vmatprep.subr.bf16.mxu0 0
    %1208 = vmatpush2.bf16.msra.mxu0 %v1058
    %1209 = vmatprep.subr.bf16.mxu0 0
    %1210 = vmatpush2.bf16.msra.mxu0 %v1057
    %1211 = vmatprep.subr.bf16.mxu0 0
    %1212 = vmatpush2.bf16.msra.mxu0 %v1056
    %1213 = vmatprep.subr.bf16.mxu0 0
    %1214 = vmatpush2.bf16.msra.mxu0 %v1055
    %1215 = vmatprep.subr.bf16.mxu0 0
    %1216 = vmatpush2.bf16.msra.mxu0 %v1054
    %1217 = vmatprep.mubr.bf16.mxu0 %v1153
    %1218 = vmatmul.mubr.bf16.gmra.mxu0 %v1152
    %v1219 = vpop.f32.mrf.mxu0
    %v1220 = vadd.f32 %v1075, %v1219
    %v1221 = vpop.f32.mrf.mxu0
    %v1222 = vpop.f32.mrf.mxu0
    %v1223 = vadd.f32 %v1080, %v1222
    %v1224 = vpop.f32.mrf.mxu0
    %1225 = vmatprep.mubr.bf16.mxu0 %v1156
    %1226 = vmatmul.mubr.bf16.gmra.mxu0 %v1155
    %v1227 = vpop.f32.mrf.mxu0
    %v1228 = vadd.f32 %v1085, %v1227
    %v1229 = vpop.f32.mrf.mxu0
    %v1230 = vpop.f32.mrf.mxu0
    %v1231 = vadd.f32 %v1090, %v1230
    %v1232 = vpop.f32.mrf.mxu0
    %1233 = vmatprep.mubr.bf16.mxu0 %v1159
    %1234 = vmatmul.mubr.bf16.gmra.mxu0 %v1158
    %v1235 = vpop.f32.mrf.mxu0
    %v1236 = vadd.f32 %v1095, %v1235
    %v1237 = vpop.f32.mrf.mxu0
    %v1238 = vpop.f32.mrf.mxu0
    %v1239 = vadd.f32 %v1100, %v1238
    %v1240 = vpop.f32.mrf.mxu0
    %1241 = vmatprep.mubr.bf16.mxu0 %v1162
    %1242 = vmatmul.mubr.bf16.gmra.mxu0 %v1161
    %v1243 = vpop.f32.mrf.mxu0
    %v1244 = vadd.f32 %v1105, %v1243
    %v1245 = vpop.f32.mrf.mxu0
    %v1246 = vpop.f32.mrf.mxu0
    %v1247 = vadd.f32 %v1110, %v1246
    %v1248 = vpop.f32.mrf.mxu0
    %1249 = vdwg.mxu0
    %1250 = vmatprep.subr.bf16.mxu0 0
    %1251 = vmatpush1.bf16.msra.mxu0 0
    %1252 = vmatprep.subr.bf16.mxu0 0
    %1253 = vmatpush1.bf16.msra.mxu0 0
    %1254 = vmatprep.subr.bf16.mxu0 0
    %1255 = vmatpush1.bf16.msra.mxu0 0
    %1256 = vmatprep.subr.bf16.mxu0 0
    %1257 = vmatpush1.bf16.msra.mxu0 0
    %1258 = vmatprep.subr.bf16.mxu0 0
    %1259 = vmatpush1.bf16.msra.mxu0 0
    %1260 = vmatprep.subr.bf16.mxu0 0
    %1261 = vmatpush1.bf16.msra.mxu0 0
    %1262 = vmatprep.subr.bf16.mxu0 0
    %1263 = vmatpush1.bf16.msra.mxu0 %v1063
    %1264 = vmatprep.subr.bf16.mxu0 0
    %1265 = vmatpush1.bf16.msra.mxu0 %v1062
    %1266 = vmatprep.subr.bf16.mxu0 0
    %1267 = vmatpush2.bf16.msra.mxu0 0
    %1268 = vmatprep.subr.bf16.mxu0 0
    %1269 = vmatpush2.bf16.msra.mxu0 0
    %1270 = vmatprep.subr.bf16.mxu0 0
    %1271 = vmatpush2.bf16.msra.mxu0 0
    %1272 = vmatprep.subr.bf16.mxu0 0
    %1273 = vmatpush2.bf16.msra.mxu0 0
    %1274 = vmatprep.subr.bf16.mxu0 0
    %1275 = vmatpush2.bf16.msra.mxu0 0
    %1276 = vmatprep.subr.bf16.mxu0 0
    %1277 = vmatpush2.bf16.msra.mxu0 0
    %1278 = vmatprep.subr.bf16.mxu0 0
    %1279 = vmatpush2.bf16.msra.mxu0 0
    %1280 = vmatprep.subr.bf16.mxu0 0
    %1281 = vmatpush2.bf16.msra.mxu0 0
    %1282 = vmatprep.mubr.bf16.mxu0 0
    %1283 = vmatmul.mubr.bf16.gmra.mxu0 %v1174
    %v1284 = vpop.f32.mrf.mxu0
    %v1285 = vadd.f32 %v1220, %v1284
    %v1286 = vpop.f32.mrf.mxu0
    %v1287 = vpop.f32.mrf.mxu0
    %v1288 = vadd.f32 %v1223, %v1287
    %v1289 = vpop.f32.mrf.mxu0
    %1290 = vmatprep.mubr.bf16.mxu0 0
    %1291 = vmatmul.mubr.bf16.gmra.mxu0 %v1177
    %v1292 = vpop.f32.mrf.mxu0
    %v1293 = vadd.f32 %v1228, %v1292
    %v1294 = vpop.f32.mrf.mxu0
    %v1295 = vpop.f32.mrf.mxu0
    %v1296 = vadd.f32 %v1231, %v1295
    %v1297 = vpop.f32.mrf.mxu0
    %1298 = vmatprep.mubr.bf16.mxu0 0
    %1299 = vmatmul.mubr.bf16.gmra.mxu0 %v1180
    %v1300 = vpop.f32.mrf.mxu0
    %v1301 = vadd.f32 %v1236, %v1300
    %v1302 = vpop.f32.mrf.mxu0
    %v1303 = vpop.f32.mrf.mxu0
    %v1304 = vadd.f32 %v1239, %v1303
    %v1305 = vpop.f32.mrf.mxu0
    %1306 = vmatprep.mubr.bf16.mxu0 0
    %1307 = vmatmul.mubr.bf16.gmra.mxu0 %v1183
    %v1308 = vpop.f32.mrf.mxu0
    %v1309 = vadd.f32 %v1244, %v1308
    %v1310 = vpop.f32.mrf.mxu0
    %v1311 = vpop.f32.mrf.mxu0
    %v1312 = vadd.f32 %v1247, %v1311
    %v1313 = vpop.f32.mrf.mxu0
    %1314 = vdwg.mxu0
    %v1315 = vmax.f32 %v1285, 0.0
    %v1316 = vmax.f32 %v1288, 0.0
    %v1317 = vmax.f32 %v1293, 0.0
    %v1318 = vmax.f32 %v1296, 0.0
    %v1319 = vmax.f32 %v1301, 0.0
    %v1320 = vmax.f32 %v1304, 0.0
    %v1321 = vmax.f32 %v1309, 0.0
    %v1322 = vmax.f32 %v1312, 0.0
    %v1323 = vpack.c.bf16 %v1316, %v1315
    %v1324 = vpack.c.bf16 %v1318, %v1317
    %v1325 = vpack.c.bf16 %v1320, %v1319
    %v1326 = vpack.c.bf16 %v1322, %v1321
    %v1327 = vld [vmem:[%s11] sm:$0xff]
    %v1328 = vld [vmem:[%s11 + $0x8] sm:$0xff]
    %v1329 = vld [vmem:[%s11 + $0x10] sm:$0xf]
    %v1330 = vld [vmem:[%s11 + $0x14] sm:$0xff]
    %v1331 = vld [vmem:[%s11 + $0x1c] sm:$0xff]
    %v1332 = vld [vmem:[%s11 + $0x24] sm:$0xf]
    %v1339 = vunpack.c.l.b16 %v1327
    %v1340 = vunpack.c.h.b16 %v1327
    %v1341 = vunpack.c.l.b16 %v1328
    %v1342 = vunpack.c.h.b16 %v1328
    %v1343 = vunpack.c.l.b16 %v1329
    %v1344 = vunpack.c.l.b16 %v1330
    %v1345 = vunpack.c.h.b16 %v1330
    %v1346 = vunpack.c.l.b16 %v1331
    %v1347 = vunpack.c.h.b16 %v1331
    %v1348 = vunpack.c.l.b16 %v1332
    %v1349 = vpack.c.b16 %v1344, %v1339
    %v1350 = vpack.c.b16 %v1345, %v1340
    %v1351 = vpack.c.b16 %v1346, %v1341
    %v1352 = vpack.c.b16 %v1347, %v1342
    %v1353 = vpack.c.b16 %v1348, %v1343
    %vm1359 = vcmask 130048
    %v1361 = vsel %vm1359, %v1323, 0
    %v1364 = vsel %vm1359, %v1324, 0
    %v1367 = vsel %vm1359, %v1325, 0
    %v1370 = vsel %vm1359, %v1326, 0
    %1372 = vmatprep.subr.bf16.mxu0 0
    %1373 = vmatpush1.bf16.msra.mxu0 0
    %1374 = vmatprep.subr.bf16.mxu0 0
    %1375 = vmatpush1.bf16.msra.mxu0 0
    %1376 = vmatprep.subr.bf16.mxu0 0
    %1377 = vmatpush1.bf16.msra.mxu0 0
    %1378 = vmatprep.subr.bf16.mxu0 0
    %1379 = vmatpush1.bf16.msra.mxu0 0
    %1380 = vmatprep.subr.bf16.mxu0 0
    %1381 = vmatpush1.bf16.msra.mxu0 0
    %1382 = vmatprep.subr.bf16.mxu0 0
    %1383 = vmatpush1.bf16.msra.mxu0 0
    %1384 = vmatprep.subr.bf16.mxu0 0
    %1385 = vmatpush1.bf16.msra.mxu0 0
    %1386 = vmatprep.subr.bf16.mxu0 %v1350
    %1387 = vmatpush1.bf16.msra.mxu0 %v1349
    %1388 = vmatprep.subr.bf16.mxu0 0
    %1389 = vmatpush2.bf16.msra.mxu0 0
    %1390 = vmatprep.subr.bf16.mxu0 0
    %1391 = vmatpush2.bf16.msra.mxu0 0
    %1392 = vmatprep.subr.bf16.mxu0 0
    %1393 = vmatpush2.bf16.msra.mxu0 0
    %1394 = vmatprep.subr.bf16.mxu0 0
    %1395 = vmatpush2.bf16.msra.mxu0 0
    %1396 = vmatprep.subr.bf16.mxu0 0
    %1397 = vmatpush2.bf16.msra.mxu0 0
    %1398 = vmatprep.subr.bf16.mxu0 0
    %1399 = vmatpush2.bf16.msra.mxu0 0
    %1400 = vmatprep.subr.bf16.mxu0 0
    %1401 = vmatpush2.bf16.msra.mxu0 0
    %1402 = vmatprep.subr.bf16.mxu0 0
    %1403 = vmatpush2.bf16.msra.mxu0 0
    %1404 = vmatprep.mubr.bf16.mxu0 0
    %1405 = vmatmul.mubr.bf16.gmra.mxu0 %v1361
    %v1406 = vpop.f32.mrf.mxu0
    %v1407 = vadd.f32 0.0, %v1406
    %v1408 = vpop.f32.mrf.mxu0
    %v1409 = vadd.f32 0.0, %v1408
    %v1410 = vpop.f32.mrf.mxu0
    %v1411 = vadd.f32 0.0, %v1410
    %v1412 = vpop.f32.mrf.mxu0
    %v1413 = vadd.f32 0.0, %v1412
    %1414 = vmatprep.mubr.bf16.mxu0 0
    %1415 = vmatmul.mubr.bf16.gmra.mxu0 %v1364
    %v1416 = vpop.f32.mrf.mxu0
    %v1417 = vadd.f32 0.0, %v1416
    %v1418 = vpop.f32.mrf.mxu0
    %v1419 = vadd.f32 0.0, %v1418
    %v1420 = vpop.f32.mrf.mxu0
    %v1421 = vadd.f32 0.0, %v1420
    %v1422 = vpop.f32.mrf.mxu0
    %v1423 = vadd.f32 0.0, %v1422
    %1424 = vmatprep.mubr.bf16.mxu0 0
    %1425 = vmatmul.mubr.bf16.gmra.mxu0 %v1367
    %v1426 = vpop.f32.mrf.mxu0
    %v1427 = vadd.f32 0.0, %v1426
    %v1428 = vpop.f32.mrf.mxu0
    %v1429 = vadd.f32 0.0, %v1428
    %v1430 = vpop.f32.mrf.mxu0
    %v1431 = vadd.f32 0.0, %v1430
    %v1432 = vpop.f32.mrf.mxu0
    %v1433 = vadd.f32 0.0, %v1432
    %1434 = vmatprep.mubr.bf16.mxu0 0
    %1435 = vmatmul.mubr.bf16.gmra.mxu0 %v1370
    %v1436 = vpop.f32.mrf.mxu0
    %v1437 = vadd.f32 0.0, %v1436
    %v1438 = vpop.f32.mrf.mxu0
    %v1439 = vadd.f32 0.0, %v1438
    %v1440 = vpop.f32.mrf.mxu0
    %v1441 = vadd.f32 0.0, %v1440
    %v1442 = vpop.f32.mrf.mxu0
    %v1443 = vadd.f32 0.0, %v1442
    %1444 = vdwg.mxu0
    %1445 = vmatprep.subr.bf16.mxu0 0
    %1446 = vmatpush1.bf16.msra.mxu0 0
    %1447 = vmatprep.subr.bf16.mxu0 0
    %1448 = vmatpush1.bf16.msra.mxu0 0
    %1449 = vmatprep.subr.bf16.mxu0 0
    %1450 = vmatpush1.bf16.msra.mxu0 0
    %1451 = vmatprep.subr.bf16.mxu0 0
    %1452 = vmatpush1.bf16.msra.mxu0 0
    %1453 = vmatprep.subr.bf16.mxu0 0
    %1454 = vmatpush1.bf16.msra.mxu0 0
    %1455 = vmatprep.subr.bf16.mxu0 0
    %1456 = vmatpush1.bf16.msra.mxu0 0
    %1457 = vmatprep.subr.bf16.mxu0 0
    %1458 = vmatpush1.bf16.msra.mxu0 0
    %1459 = vmatprep.subr.bf16.mxu0 %v1352
    %1460 = vmatpush1.bf16.msra.mxu0 %v1351
    %1461 = vmatprep.subr.bf16.mxu0 0
    %1462 = vmatpush2.bf16.msra.mxu0 0
    %1463 = vmatprep.subr.bf16.mxu0 0
    %1464 = vmatpush2.bf16.msra.mxu0 0
    %1465 = vmatprep.subr.bf16.mxu0 0
    %1466 = vmatpush2.bf16.msra.mxu0 0
    %1467 = vmatprep.subr.bf16.mxu0 0
    %1468 = vmatpush2.bf16.msra.mxu0 0
    %1469 = vmatprep.subr.bf16.mxu0 0
    %1470 = vmatpush2.bf16.msra.mxu0 0
    %1471 = vmatprep.subr.bf16.mxu0 0
    %1472 = vmatpush2.bf16.msra.mxu0 0
    %1473 = vmatprep.subr.bf16.mxu0 0
    %1474 = vmatpush2.bf16.msra.mxu0 0
    %1475 = vmatprep.subr.bf16.mxu0 0
    %1476 = vmatpush2.bf16.msra.mxu0 0
    %1477 = vmatprep.mubr.bf16.mxu0 0
    %1478 = vmatmul.mubr.bf16.gmra.mxu0 %v1361
    %v1479 = vpop.f32.mrf.mxu0
    %v1480 = vadd.f32 0.0, %v1479
    %v1481 = vpop.f32.mrf.mxu0
    %v1482 = vadd.f32 0.0, %v1481
    %v1483 = vpop.f32.mrf.mxu0
    %v1484 = vadd.f32 0.0, %v1483
    %v1485 = vpop.f32.mrf.mxu0
    %v1486 = vadd.f32 0.0, %v1485
    %1487 = vmatprep.mubr.bf16.mxu0 0
    %1488 = vmatmul.mubr.bf16.gmra.mxu0 %v1364
    %v1489 = vpop.f32.mrf.mxu0
    %v1490 = vadd.f32 0.0, %v1489
    %v1491 = vpop.f32.mrf.mxu0
    %v1492 = vadd.f32 0.0, %v1491
    %v1493 = vpop.f32.mrf.mxu0
    %v1494 = vadd.f32 0.0, %v1493
    %v1495 = vpop.f32.mrf.mxu0
    %v1496 = vadd.f32 0.0, %v1495
    %1497 = vmatprep.mubr.bf16.mxu0 0
    %1498 = vmatmul.mubr.bf16.gmra.mxu0 %v1367
    %v1499 = vpop.f32.mrf.mxu0
    %v1500 = vadd.f32 0.0, %v1499
    %v1501 = vpop.f32.mrf.mxu0
    %v1502 = vadd.f32 0.0, %v1501
    %v1503 = vpop.f32.mrf.mxu0
    %v1504 = vadd.f32 0.0, %v1503
    %v1505 = vpop.f32.mrf.mxu0
    %v1506 = vadd.f32 0.0, %v1505
    %1507 = vmatprep.mubr.bf16.mxu0 0
    %1508 = vmatmul.mubr.bf16.gmra.mxu0 %v1370
    %v1509 = vpop.f32.mrf.mxu0
    %v1510 = vadd.f32 0.0, %v1509
    %v1511 = vpop.f32.mrf.mxu0
    %v1512 = vadd.f32 0.0, %v1511
    %v1513 = vpop.f32.mrf.mxu0
    %v1514 = vadd.f32 0.0, %v1513
    %v1515 = vpop.f32.mrf.mxu0
    %v1516 = vadd.f32 0.0, %v1515
    %1517 = vdwg.mxu0
    %1518 = vmatprep.subr.bf16.mxu0 0
    %1519 = vmatpush1.bf16.msra.mxu0 0
    %1520 = vmatprep.subr.bf16.mxu0 0
    %1521 = vmatpush1.bf16.msra.mxu0 0
    %1522 = vmatprep.subr.bf16.mxu0 0
    %1523 = vmatpush1.bf16.msra.mxu0 0
    %1524 = vmatprep.subr.bf16.mxu0 0
    %1525 = vmatpush1.bf16.msra.mxu0 0
    %1526 = vmatprep.subr.bf16.mxu0 0
    %1527 = vmatpush1.bf16.msra.mxu0 0
    %1528 = vmatprep.subr.bf16.mxu0 0
    %1529 = vmatpush1.bf16.msra.mxu0 0
    %1530 = vmatprep.subr.bf16.mxu0 0
    %1531 = vmatpush1.bf16.msra.mxu0 0
    %1532 = vmatprep.subr.bf16.mxu0 0
    %1533 = vmatpush1.bf16.msra.mxu0 %v1353
    %1534 = vmatprep.subr.bf16.mxu0 0
    %1535 = vmatpush2.bf16.msra.mxu0 0
    %1536 = vmatprep.subr.bf16.mxu0 0
    %1537 = vmatpush2.bf16.msra.mxu0 0
    %1538 = vmatprep.subr.bf16.mxu0 0
    %1539 = vmatpush2.bf16.msra.mxu0 0
    %1540 = vmatprep.subr.bf16.mxu0 0
    %1541 = vmatpush2.bf16.msra.mxu0 0
    %1542 = vmatprep.subr.bf16.mxu0 0
    %1543 = vmatpush2.bf16.msra.mxu0 0
    %1544 = vmatprep.subr.bf16.mxu0 0
    %1545 = vmatpush2.bf16.msra.mxu0 0
    %1546 = vmatprep.subr.bf16.mxu0 0
    %1547 = vmatpush2.bf16.msra.mxu0 0
    %1548 = vmatprep.subr.bf16.mxu0 0
    %1549 = vmatpush2.bf16.msra.mxu0 0
    %1550 = vmatprep.mubr.bf16.mxu0 0
    %1551 = vmatmul.mubr.bf16.gmra.mxu0 %v1361
    %v1552 = vpop.f32.mrf.mxu0
    %v1553 = vadd.f32 0.0, %v1552
    %v1554 = vpop.f32.mrf.mxu0
    %v1555 = vpop.f32.mrf.mxu0
    %v1556 = vadd.f32 0.0, %v1555
    %v1557 = vpop.f32.mrf.mxu0
    %1558 = vmatprep.mubr.bf16.mxu0 0
    %1559 = vmatmul.mubr.bf16.gmra.mxu0 %v1364
    %v1560 = vpop.f32.mrf.mxu0
    %v1561 = vadd.f32 0.0, %v1560
    %v1562 = vpop.f32.mrf.mxu0
    %v1563 = vpop.f32.mrf.mxu0
    %v1564 = vadd.f32 0.0, %v1563
    %v1565 = vpop.f32.mrf.mxu0
    %1566 = vmatprep.mubr.bf16.mxu0 0
    %1567 = vmatmul.mubr.bf16.gmra.mxu0 %v1367
    %v1568 = vpop.f32.mrf.mxu0
    %v1569 = vadd.f32 0.0, %v1568
    %v1570 = vpop.f32.mrf.mxu0
    %v1571 = vpop.f32.mrf.mxu0
    %v1572 = vadd.f32 0.0, %v1571
    %v1573 = vpop.f32.mrf.mxu0
    %1574 = vmatprep.mubr.bf16.mxu0 0
    %1575 = vmatmul.mubr.bf16.gmra.mxu0 %v1370
    %v1576 = vpop.f32.mrf.mxu0
    %v1577 = vadd.f32 0.0, %v1576
    %v1578 = vpop.f32.mrf.mxu0
    %v1579 = vpop.f32.mrf.mxu0
    %v1580 = vadd.f32 0.0, %v1579
    %v1581 = vpop.f32.mrf.mxu0
    %1582 = vdwg.mxu0
    %1591 = vrot.lane.b32.xlu0 %v1407, 64
    %v1592 = vpop.permute.xlu0 %1591
    %1593 = vrot.lane.b32.xlu0 %v1411, 64
    %v1594 = vpop.permute.xlu0 %1593
    %1595 = vrot.lane.b32.xlu0 %v1417, 64
    %v1596 = vpop.permute.xlu0 %1595
    %1597 = vrot.lane.b32.xlu0 %v1421, 64
    %v1598 = vpop.permute.xlu0 %1597
    %1599 = vrot.lane.b32.xlu0 %v1427, 64
    %v1600 = vpop.permute.xlu0 %1599
    %1601 = vrot.lane.b32.xlu0 %v1431, 64
    %v1602 = vpop.permute.xlu0 %1601
    %1603 = vrot.lane.b32.xlu0 %v1437, 64
    %v1604 = vpop.permute.xlu0 %1603
    %1605 = vrot.lane.b32.xlu0 %v1441, 64
    %v1606 = vpop.permute.xlu0 %1605
    %1623 = vrot.lane.b32.xlu0 %v1409, 64
    %v1624 = vpop.permute.xlu0 %1623
    %1625 = vrot.lane.b32.xlu0 %v1413, 64
    %v1626 = vpop.permute.xlu0 %1625
    %1627 = vrot.lane.b32.xlu0 %v1419, 64
    %v1628 = vpop.permute.xlu0 %1627
    %1629 = vrot.lane.b32.xlu0 %v1423, 64
    %v1630 = vpop.permute.xlu0 %1629
    %1631 = vrot.lane.b32.xlu0 %v1429, 64
    %v1632 = vpop.permute.xlu0 %1631
    %1633 = vrot.lane.b32.xlu0 %v1433, 64
    %v1634 = vpop.permute.xlu0 %1633
    %1635 = vrot.lane.b32.xlu0 %v1439, 64
    %v1636 = vpop.permute.xlu0 %1635
    %1637 = vrot.lane.b32.xlu0 %v1443, 64
    %v1638 = vpop.permute.xlu0 %1637
    %1655 = vrot.lane.b32.xlu0 %v1480, 64
    %v1656 = vpop.permute.xlu0 %1655
    %1657 = vrot.lane.b32.xlu0 %v1484, 64
    %v1658 = vpop.permute.xlu0 %1657
    %1659 = vrot.lane.b32.xlu0 %v1490, 64
    %v1660 = vpop.permute.xlu0 %1659
    %1661 = vrot.lane.b32.xlu0 %v1494, 64
    %v1662 = vpop.permute.xlu0 %1661
    %1663 = vrot.lane.b32.xlu0 %v1500, 64
    %v1664 = vpop.permute.xlu0 %1663
    %1665 = vrot.lane.b32.xlu0 %v1504, 64
    %v1666 = vpop.permute.xlu0 %1665
    %1667 = vrot.lane.b32.xlu0 %v1510, 64
    %v1668 = vpop.permute.xlu0 %1667
    %1669 = vrot.lane.b32.xlu0 %v1514, 64
    %v1670 = vpop.permute.xlu0 %1669
    %1687 = vrot.lane.b32.xlu0 %v1482, 64
    %v1688 = vpop.permute.xlu0 %1687
    %1689 = vrot.lane.b32.xlu0 %v1486, 64
    %v1690 = vpop.permute.xlu0 %1689
    %1691 = vrot.lane.b32.xlu0 %v1492, 64
    %v1692 = vpop.permute.xlu0 %1691
    %1693 = vrot.lane.b32.xlu0 %v1496, 64
    %v1694 = vpop.permute.xlu0 %1693
    %1695 = vrot.lane.b32.xlu0 %v1502, 64
    %v1696 = vpop.permute.xlu0 %1695
    %1697 = vrot.lane.b32.xlu0 %v1506, 64
    %v1698 = vpop.permute.xlu0 %1697
    %1699 = vrot.lane.b32.xlu0 %v1512, 64
    %v1700 = vpop.permute.xlu0 %1699
    %1701 = vrot.lane.b32.xlu0 %v1516, 64
    %v1702 = vpop.permute.xlu0 %1701
    %v1711 = vld [vmem:[%s5] sm:$0xff]
    %v1712 = vld [vmem:[%s5 + $0x8] sm:$0xff]
    %v1713 = vld [vmem:[%s5 + $0x10] sm:$0xf]
    %v1714 = vld [vmem:[%s5 + $0x14] sm:$0xff]
    %v1715 = vld [vmem:[%s5 + $0x1c] sm:$0xff]
    %v1716 = vld [vmem:[%s5 + $0x24] sm:$0xf]
    %v1717 = vld [vmem:[%s5 + $0x28] sm:$0xff]
    %v1718 = vld [vmem:[%s5 + $0x30] sm:$0xff]
    %v1719 = vld [vmem:[%s5 + $0x38] sm:$0xf]
    %v1720 = vld [vmem:[%s5 + $0x3c] sm:$0xff]
    %v1721 = vld [vmem:[%s5 + $0x44] sm:$0xff]
    %v1722 = vld [vmem:[%s5 + $0x4c] sm:$0xf]
    %v1723 = vpack.c.bf16 %v1411, %v1407
    %v1724 = vpack.c.bf16 %v1421, %v1417
    %v1725 = vpack.c.bf16 %v1431, %v1427
    %v1726 = vpack.c.bf16 %v1441, %v1437
    %v1727 = vpack.c.bf16 %v1594, %v1592
    %v1728 = vpack.c.bf16 %v1598, %v1596
    %v1729 = vpack.c.bf16 %v1602, %v1600
    %v1730 = vpack.c.bf16 %v1606, %v1604
    %v1731 = vpack.c.bf16 %v1413, %v1409
    %v1732 = vpack.c.bf16 %v1423, %v1419
    %v1733 = vpack.c.bf16 %v1433, %v1429
    %v1734 = vpack.c.bf16 %v1443, %v1439
    %v1735 = vpack.c.bf16 %v1626, %v1624
    %v1736 = vpack.c.bf16 %v1630, %v1628
    %v1737 = vpack.c.bf16 %v1634, %v1632
    %v1738 = vpack.c.bf16 %v1638, %v1636
    %v1739 = vpack.c.bf16 %v1484, %v1480
    %v1740 = vpack.c.bf16 %v1494, %v1490
    %v1741 = vpack.c.bf16 %v1504, %v1500
    %v1742 = vpack.c.bf16 %v1514, %v1510
    %v1743 = vpack.c.bf16 %v1658, %v1656
    %v1744 = vpack.c.bf16 %v1662, %v1660
    %v1745 = vpack.c.bf16 %v1666, %v1664
    %v1746 = vpack.c.bf16 %v1670, %v1668
    %v1747 = vpack.c.bf16 %v1486, %v1482
    %v1748 = vpack.c.bf16 %v1496, %v1492
    %v1749 = vpack.c.bf16 %v1506, %v1502
    %v1750 = vpack.c.bf16 %v1516, %v1512
    %v1751 = vpack.c.bf16 %v1690, %v1688
    %v1752 = vpack.c.bf16 %v1694, %v1692
    %v1753 = vpack.c.bf16 %v1698, %v1696
    %v1754 = vpack.c.bf16 %v1702, %v1700
    %v1755 = vpack.c.bf16 %v1556, %v1553
    %v1756 = vpack.c.bf16 %v1564, %v1561
    %v1757 = vpack.c.bf16 %v1572, %v1569
    %v1758 = vpack.c.bf16 %v1580, %v1577
    %v1759 = vld [vmem:[%s6] sm:$0xff]
    %v1760 = vld [vmem:[%s6 + $0x8] sm:$0xff]
    %v1761 = vld [vmem:[%s6 + $0x10] sm:$0xff]
    %v1762 = vld [vmem:[%s6 + $0x18] sm:$0xff]
    %1764 = vset.pattern.permute.xlu0 0
    %1765 = vperm.xlu0 %1764, %v1759
    %v1766 = vpop.permute.xlu0 %1765
    %1769 = vset.pattern.permute.xlu0 0
    %1770 = vperm.xlu0 %1769, %v1760
    %v1771 = vpop.permute.xlu0 %1770
    %1774 = vset.pattern.permute.xlu0 0
    %1775 = vperm.xlu0 %1774, %v1761
    %v1776 = vpop.permute.xlu0 %1775
    %1779 = vset.pattern.permute.xlu0 0
    %1780 = vperm.xlu0 %1779, %v1762
    %v1781 = vpop.permute.xlu0 %1780
    %v1795 = vunpack.c.l.b16 %v1711
    %v1796 = vunpack.c.h.b16 %v1711
    %v1797 = vunpack.c.l.b16 %v1712
    %v1798 = vunpack.c.h.b16 %v1712
    %v1799 = vunpack.c.l.b16 %v1713
    %v1800 = vunpack.c.l.b16 %v1714
    %v1801 = vunpack.c.h.b16 %v1714
    %v1802 = vunpack.c.l.b16 %v1715
    %v1803 = vunpack.c.h.b16 %v1715
    %v1804 = vunpack.c.l.b16 %v1716
    %v1805 = vunpack.c.l.b16 %v1717
    %v1806 = vunpack.c.h.b16 %v1717
    %v1807 = vunpack.c.l.b16 %v1718
    %v1808 = vunpack.c.h.b16 %v1718
    %v1809 = vunpack.c.l.b16 %v1719
    %v1810 = vunpack.c.l.b16 %v1720
    %v1811 = vunpack.c.h.b16 %v1720
    %v1812 = vunpack.c.l.b16 %v1721
    %v1813 = vunpack.c.h.b16 %v1721
    %v1814 = vunpack.c.l.b16 %v1722
    %v1815 = vpack.c.b16 %v1800, %v1795
    %v1816 = vpack.c.b16 %v1801, %v1796
    %v1817 = vpack.c.b16 %v1802, %v1797
    %v1818 = vpack.c.b16 %v1803, %v1798
    %v1819 = vpack.c.b16 %v1804, %v1799
    %v1820 = vpack.c.b16 %v1810, %v1805
    %v1821 = vpack.c.b16 %v1811, %v1806
    %v1822 = vpack.c.b16 %v1812, %v1807
    %v1823 = vpack.c.b16 %v1813, %v1808
    %v1824 = vpack.c.b16 %v1814, %v1809
    %v1834 = vsel %vm882, %v1819, 0
    %v1837 = vsel %vm882, %v1824, 0
    %1839 = vmatprep.subr.bf16.mxu0 0
    %1840 = vmatpush1.bf16.msra.mxu0 %v1730
    %1841 = vmatprep.subr.bf16.mxu0 0
    %1842 = vmatpush1.bf16.msra.mxu0 %v1729
    %1843 = vmatprep.subr.bf16.mxu0 0
    %1844 = vmatpush1.bf16.msra.mxu0 %v1728
    %1845 = vmatprep.subr.bf16.mxu0 0
    %1846 = vmatpush1.bf16.msra.mxu0 %v1727
    %1847 = vmatprep.subr.bf16.mxu0 0
    %1848 = vmatpush1.bf16.msra.mxu0 %v1726
    %1849 = vmatprep.subr.bf16.mxu0 0
    %1850 = vmatpush1.bf16.msra.mxu0 %v1725
    %1851 = vmatprep.subr.bf16.mxu0 0
    %1852 = vmatpush1.bf16.msra.mxu0 %v1724
    %1853 = vmatprep.subr.bf16.mxu0 0
    %1854 = vmatpush1.bf16.msra.mxu0 %v1723
    %1855 = vmatprep.subr.bf16.mxu0 0
    %1856 = vmatpush2.bf16.msra.mxu0 %v1738
    %1857 = vmatprep.subr.bf16.mxu0 0
    %1858 = vmatpush2.bf16.msra.mxu0 %v1737
    %1859 = vmatprep.subr.bf16.mxu0 0
    %1860 = vmatpush2.bf16.msra.mxu0 %v1736
    %1861 = vmatprep.subr.bf16.mxu0 0
    %1862 = vmatpush2.bf16.msra.mxu0 %v1735
    %1863 = vmatprep.subr.bf16.mxu0 0
    %1864 = vmatpush2.bf16.msra.mxu0 %v1734
    %1865 = vmatprep.subr.bf16.mxu0 0
    %1866 = vmatpush2.bf16.msra.mxu0 %v1733
    %1867 = vmatprep.subr.bf16.mxu0 0
    %1868 = vmatpush2.bf16.msra.mxu0 %v1732
    %1869 = vmatprep.subr.bf16.mxu0 0
    %1870 = vmatpush2.bf16.msra.mxu0 %v1731
    %1871 = vmatprep.mubr.bf16.mxu0 %v1816
    %1872 = vmatmul.mubr.bf16.gmra.mxu0 %v1815
    %v1873 = vpop.f32.mrf.mxu0
    %v1874 = vadd.f32 %v1766, %v1873
    %v1875 = vpop.f32.mrf.mxu0
    %v1876 = vpop.f32.mrf.mxu0
    %v1877 = vadd.f32 %v1771, %v1876
    %v1878 = vpop.f32.mrf.mxu0
    %1879 = vmatprep.mubr.bf16.mxu0 %v1821
    %1880 = vmatmul.mubr.bf16.gmra.mxu0 %v1820
    %v1881 = vpop.f32.mrf.mxu0
    %v1882 = vadd.f32 %v1776, %v1881
    %v1883 = vpop.f32.mrf.mxu0
    %v1884 = vpop.f32.mrf.mxu0
    %v1885 = vadd.f32 %v1781, %v1884
    %v1886 = vpop.f32.mrf.mxu0
    %1887 = vdwg.mxu0
    %1888 = vmatprep.subr.bf16.mxu0 0
    %1889 = vmatpush1.bf16.msra.mxu0 %v1746
    %1890 = vmatprep.subr.bf16.mxu0 0
    %1891 = vmatpush1.bf16.msra.mxu0 %v1745
    %1892 = vmatprep.subr.bf16.mxu0 0
    %1893 = vmatpush1.bf16.msra.mxu0 %v1744
    %1894 = vmatprep.subr.bf16.mxu0 0
    %1895 = vmatpush1.bf16.msra.mxu0 %v1743
    %1896 = vmatprep.subr.bf16.mxu0 0
    %1897 = vmatpush1.bf16.msra.mxu0 %v1742
    %1898 = vmatprep.subr.bf16.mxu0 0
    %1899 = vmatpush1.bf16.msra.mxu0 %v1741
    %1900 = vmatprep.subr.bf16.mxu0 0
    %1901 = vmatpush1.bf16.msra.mxu0 %v1740
    %1902 = vmatprep.subr.bf16.mxu0 0
    %1903 = vmatpush1.bf16.msra.mxu0 %v1739
    %1904 = vmatprep.subr.bf16.mxu0 0
    %1905 = vmatpush2.bf16.msra.mxu0 %v1754
    %1906 = vmatprep.subr.bf16.mxu0 0
    %1907 = vmatpush2.bf16.msra.mxu0 %v1753
    %1908 = vmatprep.subr.bf16.mxu0 0
    %1909 = vmatpush2.bf16.msra.mxu0 %v1752
    %1910 = vmatprep.subr.bf16.mxu0 0
    %1911 = vmatpush2.bf16.msra.mxu0 %v1751
    %1912 = vmatprep.subr.bf16.mxu0 0
    %1913 = vmatpush2.bf16.msra.mxu0 %v1750
    %1914 = vmatprep.subr.bf16.mxu0 0
    %1915 = vmatpush2.bf16.msra.mxu0 %v1749
    %1916 = vmatprep.subr.bf16.mxu0 0
    %1917 = vmatpush2.bf16.msra.mxu0 %v1748
    %1918 = vmatprep.subr.bf16.mxu0 0
    %1919 = vmatpush2.bf16.msra.mxu0 %v1747
    %1920 = vmatprep.mubr.bf16.mxu0 %v1818
    %1921 = vmatmul.mubr.bf16.gmra.mxu0 %v1817
    %v1922 = vpop.f32.mrf.mxu0
    %v1923 = vadd.f32 %v1874, %v1922
    %v1924 = vpop.f32.mrf.mxu0
    %v1925 = vpop.f32.mrf.mxu0
    %v1926 = vadd.f32 %v1877, %v1925
    %v1927 = vpop.f32.mrf.mxu0
    %1928 = vmatprep.mubr.bf16.mxu0 %v1823
    %1929 = vmatmul.mubr.bf16.gmra.mxu0 %v1822
    %v1930 = vpop.f32.mrf.mxu0
    %v1931 = vadd.f32 %v1882, %v1930
    %v1932 = vpop.f32.mrf.mxu0
    %v1933 = vpop.f32.mrf.mxu0
    %v1934 = vadd.f32 %v1885, %v1933
    %v1935 = vpop.f32.mrf.mxu0
    %1936 = vdwg.mxu0
    %1937 = vmatprep.subr.bf16.mxu0 0
    %1938 = vmatpush1.bf16.msra.mxu0 0
    %1939 = vmatprep.subr.bf16.mxu0 0
    %1940 = vmatpush1.bf16.msra.mxu0 0
    %1941 = vmatprep.subr.bf16.mxu0 0
    %1942 = vmatpush1.bf16.msra.mxu0 0
    %1943 = vmatprep.subr.bf16.mxu0 0
    %1944 = vmatpush1.bf16.msra.mxu0 0
    %1945 = vmatprep.subr.bf16.mxu0 0
    %1946 = vmatpush1.bf16.msra.mxu0 %v1758
    %1947 = vmatprep.subr.bf16.mxu0 0
    %1948 = vmatpush1.bf16.msra.mxu0 %v1757
    %1949 = vmatprep.subr.bf16.mxu0 0
    %1950 = vmatpush1.bf16.msra.mxu0 %v1756
    %1951 = vmatprep.subr.bf16.mxu0 0
    %1952 = vmatpush1.bf16.msra.mxu0 %v1755
    %1953 = vmatprep.subr.bf16.mxu0 0
    %1954 = vmatpush2.bf16.msra.mxu0 0
    %1955 = vmatprep.subr.bf16.mxu0 0
    %1956 = vmatpush2.bf16.msra.mxu0 0
    %1957 = vmatprep.subr.bf16.mxu0 0
    %1958 = vmatpush2.bf16.msra.mxu0 0
    %1959 = vmatprep.subr.bf16.mxu0 0
    %1960 = vmatpush2.bf16.msra.mxu0 0
    %1961 = vmatprep.subr.bf16.mxu0 0
    %1962 = vmatpush2.bf16.msra.mxu0 0
    %1963 = vmatprep.subr.bf16.mxu0 0
    %1964 = vmatpush2.bf16.msra.mxu0 0
    %1965 = vmatprep.subr.bf16.mxu0 0
    %1966 = vmatpush2.bf16.msra.mxu0 0
    %1967 = vmatprep.subr.bf16.mxu0 0
    %1968 = vmatpush2.bf16.msra.mxu0 0
    %1969 = vmatprep.mubr.bf16.mxu0 0
    %1970 = vmatmul.mubr.bf16.gmra.mxu0 %v1834
    %v1971 = vpop.f32.mrf.mxu0
    %v1972 = vadd.f32 %v1923, %v1971
    %v1973 = vpop.f32.mrf.mxu0
    %v1974 = vpop.f32.mrf.mxu0
    %v1975 = vadd.f32 %v1926, %v1974
    %v1976 = vpop.f32.mrf.mxu0
    %1977 = vmatprep.mubr.bf16.mxu0 0
    %1978 = vmatmul.mubr.bf16.gmra.mxu0 %v1837
    %v1979 = vpop.f32.mrf.mxu0
    %v1980 = vadd.f32 %v1931, %v1979
    %v1981 = vpop.f32.mrf.mxu0
    %v1982 = vpop.f32.mrf.mxu0
    %v1983 = vadd.f32 %v1934, %v1982
    %v1984 = vpop.f32.mrf.mxu0
    %1985 = vdwg.mxu0
    %v1986 = vmax.f32 %v1972, 0.0
    %v1987 = vmax.f32 %v1975, 0.0
    %v1988 = vmax.f32 %v1980, 0.0
    %v1989 = vmax.f32 %v1983, 0.0
    %v1990 = vld [vmem:[%s7] sm:$0xf]
    %v1991 = vld [vmem:[%s7 + $0x4] sm:$0xf]
    %v1992 = vpack.c.bf16 %v1987, %v1986
    %v1993 = vpack.c.bf16 %v1989, %v1988
    %v1994 = vld [vmem:[%s8] sm:$0xff]
    %v1995 = vld [vmem:[%s8 + $0x8] sm:$0xff]
    %1997 = vset.pattern.permute.xlu0 0
    %1998 = vperm.xlu0 %1997, %v1994
    %v1999 = vpop.permute.xlu0 %1998
    %2002 = vset.pattern.permute.xlu0 0
    %2003 = vperm.xlu0 %2002, %v1995
    %v2004 = vpop.permute.xlu0 %2003
    %v2008 = vunpack.c.l.b16 %v1990
    %v2009 = vunpack.c.l.b16 %v1991
    %v2010 = vpack.c.b16 %v2009, %v2008
    %v2012 = vsel %vm1172, %v2010, 0
    %2014 = vmatprep.subr.bf16.mxu0 0
    %2015 = vmatpush1.bf16.msra.mxu0 0
    %2016 = vmatprep.subr.bf16.mxu0 0
    %2017 = vmatpush1.bf16.msra.mxu0 0
    %2018 = vmatprep.subr.bf16.mxu0 0
    %2019 = vmatpush1.bf16.msra.mxu0 0
    %2020 = vmatprep.subr.bf16.mxu0 0
    %2021 = vmatpush1.bf16.msra.mxu0 0
    %2022 = vmatprep.subr.bf16.mxu0 0
    %2023 = vmatpush1.bf16.msra.mxu0 0
    %2024 = vmatprep.subr.bf16.mxu0 0
    %2025 = vmatpush1.bf16.msra.mxu0 0
    %2026 = vmatprep.subr.bf16.mxu0 0
    %2027 = vmatpush1.bf16.msra.mxu0 %v1993
    %2028 = vmatprep.subr.bf16.mxu0 0
    %2029 = vmatpush1.bf16.msra.mxu0 %v1992
    %2030 = vmatprep.subr.bf16.mxu0 0
    %2031 = vmatpush2.bf16.msra.mxu0 0
    %2032 = vmatprep.subr.bf16.mxu0 0
    %2033 = vmatpush2.bf16.msra.mxu0 0
    %2034 = vmatprep.subr.bf16.mxu0 0
    %2035 = vmatpush2.bf16.msra.mxu0 0
    %2036 = vmatprep.subr.bf16.mxu0 0
    %2037 = vmatpush2.bf16.msra.mxu0 0
    %2038 = vmatprep.subr.bf16.mxu0 0
    %2039 = vmatpush2.bf16.msra.mxu0 0
    %2040 = vmatprep.subr.bf16.mxu0 0
    %2041 = vmatpush2.bf16.msra.mxu0 0
    %2042 = vmatprep.subr.bf16.mxu0 0
    %2043 = vmatpush2.bf16.msra.mxu0 0
    %2044 = vmatprep.subr.bf16.mxu0 0
    %2045 = vmatpush2.bf16.msra.mxu0 0
    %2046 = vmatprep.mubr.bf16.mxu0 0
    %2047 = vmatmul.mubr.bf16.gmra.mxu0 %v2012
    %v2048 = vpop.f32.mrf.mxu0
    %v2049 = vadd.f32 %v1999, %v2048
    %v2050 = vpop.f32.mrf.mxu0
    %v2051 = vpop.f32.mrf.mxu0
    %v2052 = vadd.f32 %v2004, %v2051
    %v2053 = vpop.f32.mrf.mxu0
    %2054 = vdwg.mxu0
    %v2055 = vpack.c.bf16 %v2052, %v2049
    %v2056 = vld [vmem:[%s12] sm:$0xff]
    %v2057 = vld [vmem:[%s12 + $0x8] sm:$0xff]
    %v2058 = vld [vmem:[%s12 + $0x10] sm:$0xff]
    %v2059 = vld [vmem:[%s12 + $0x18] sm:$0xff]
    %v2060 = vld [vmem:[%s12 + $0x20] sm:$0xff]
    %v2061 = vld [vmem:[%s12 + $0x28] sm:$0xff]
    %v2062 = vld [vmem:[%s12 + $0x30] sm:$0xff]
    %v2063 = vld [vmem:[%s12 + $0x38] sm:$0xff]
    %v2072 = vunpack.c.l.b16 %v2056
    %v2073 = vunpack.c.h.b16 %v2056
    %v2074 = vunpack.c.l.b16 %v2057
    %v2075 = vunpack.c.h.b16 %v2057
    %v2076 = vunpack.c.l.b16 %v2058
    %v2077 = vunpack.c.h.b16 %v2058
    %v2078 = vunpack.c.l.b16 %v2059
    %v2079 = vunpack.c.h.b16 %v2059
    %v2080 = vunpack.c.l.b16 %v2060
    %v2081 = vunpack.c.h.b16 %v2060
    %v2082 = vunpack.c.l.b16 %v2061
    %v2083 = vunpack.c.h.b16 %v2061
    %v2084 = vunpack.c.l.b16 %v2062
    %v2085 = vunpack.c.h.b16 %v2062
    %v2086 = vunpack.c.l.b16 %v2063
    %v2087 = vunpack.c.h.b16 %v2063
    %v2088 = vpack.c.b16 %v2074, %v2072
    %v2089 = vpack.c.b16 %v2075, %v2073
    %v2090 = vpack.c.b16 %v2078, %v2076
    %v2091 = vpack.c.b16 %v2079, %v2077
    %v2092 = vpack.c.b16 %v2082, %v2080
    %v2093 = vpack.c.b16 %v2083, %v2081
    %v2094 = vpack.c.b16 %v2086, %v2084
    %v2095 = vpack.c.b16 %v2087, %v2085
    %v2105 = vsel %vm882, %v2055, 0
    %2107 = vmatprep.subr.bf16.mxu0 0
    %2108 = vmatpush1.bf16.msra.mxu0 0
    %2109 = vmatprep.subr.bf16.mxu0 0
    %2110 = vmatpush1.bf16.msra.mxu0 0
    %2111 = vmatprep.subr.bf16.mxu0 0
    %2112 = vmatpush1.bf16.msra.mxu0 0
    %2113 = vmatprep.subr.bf16.mxu0 0
    %2114 = vmatpush1.bf16.msra.mxu0 0
    %2115 = vmatprep.subr.bf16.mxu0 %v2095
    %2116 = vmatpush1.bf16.msra.mxu0 %v2094
    %2117 = vmatprep.subr.bf16.mxu0 %v2093
    %2118 = vmatpush1.bf16.msra.mxu0 %v2092
    %2119 = vmatprep.subr.bf16.mxu0 %v2091
    %2120 = vmatpush1.bf16.msra.mxu0 %v2090
    %2121 = vmatprep.subr.bf16.mxu0 %v2089
    %2122 = vmatpush1.bf16.msra.mxu0 %v2088
    %2123 = vmatprep.subr.bf16.mxu0 0
    %2124 = vmatpush2.bf16.msra.mxu0 0
    %2125 = vmatprep.subr.bf16.mxu0 0
    %2126 = vmatpush2.bf16.msra.mxu0 0
    %2127 = vmatprep.subr.bf16.mxu0 0
    %2128 = vmatpush2.bf16.msra.mxu0 0
    %2129 = vmatprep.subr.bf16.mxu0 0
    %2130 = vmatpush2.bf16.msra.mxu0 0
    %2131 = vmatprep.subr.bf16.mxu0 0
    %2132 = vmatpush2.bf16.msra.mxu0 0
    %2133 = vmatprep.subr.bf16.mxu0 0
    %2134 = vmatpush2.bf16.msra.mxu0 0
    %2135 = vmatprep.subr.bf16.mxu0 0
    %2136 = vmatpush2.bf16.msra.mxu0 0
    %2137 = vmatprep.subr.bf16.mxu0 0
    %2138 = vmatpush2.bf16.msra.mxu0 0
    %2139 = vmatprep.mubr.bf16.mxu0 0
    %2140 = vmatmul.mubr.bf16.gmra.mxu0 %v2105
    %v2141 = vpop.f32.mrf.mxu0
    %v2142 = vadd.f32 0.0, %v2141
    %v2143 = vpop.f32.mrf.mxu0
    %v2144 = vadd.f32 0.0, %v2143
    %v2145 = vpop.f32.mrf.mxu0
    %v2146 = vadd.f32 0.0, %v2145
    %v2147 = vpop.f32.mrf.mxu0
    %v2148 = vadd.f32 0.0, %v2147
    %2149 = vdwg.mxu0
    %2150 = vst [vmem:[#allocation7] sm:$0xff] %v2142
    %2151 = vst [vmem:[#allocation7 + $0x8] sm:$0xff] %v2144
    %2152 = vst [vmem:[#allocation7 + $0x10] sm:$0xff] %v2146
    %2153 = vst [vmem:[#allocation7 + $0x18] sm:$0xff] %v2148
    %v2154 = vld [vmem:[%s13] sm:$0xff]
    %v2155 = vld [vmem:[%s13 + $0x8] sm:$0xff]
    %v2156 = vld [vmem:[%s13 + $0x10] sm:$0xff]
    %v2157 = vld [vmem:[%s13 + $0x18] sm:$0xff]
    %v2158 = vsub.f32 %v2142, %v2154
    %v2159 = vsub.f32 %v2144, %v2155
    %v2160 = vsub.f32 %v2146, %v2156
    %v2161 = vsub.f32 %v2148, %v2157
    %v2162 = vld [vmem:[%s14] sm:$0xff]
    %v2163 = vld [vmem:[%s14 + $0x8] sm:$0xff]
    %v2164 = vld [vmem:[%s14 + $0x10] sm:$0xff]
    %v2165 = vld [vmem:[%s14 + $0x18] sm:$0xff]
    %v2166 = vmul.f32 %v2162, %v2158
    %v2167 = vmul.f32 %v2163, %v2159
    %v2168 = vmul.f32 %v2164, %v2160
    %v2169 = vmul.f32 %v2165, %v2161
    %v2170 = vmul.f32 %v2166, %v2158
    %v2171 = vmul.f32 %v2167, %v2159
    %v2172 = vmul.f32 %v2168, %v2160
    %v2173 = vmul.f32 %v2169, %v2161
    %v2174 = vadd.f32 %v2170, %v2171
    %2175 = vadd.xlane.f32.xlu0 %v2174
    %v2176 = vpop.xlane.xlu0 %2175
    %v2177 = vadd.f32 %v2172, %v2173
    %2178 = vadd.xlane.f32.xlu0 %v2177
    %v2179 = vpop.xlane.xlu0 %2178
    %vm2180 = vcmask 7168
    %2181 = vst.msk [vmem:[#allocation2] sm:$0xff] %vm2180, %v2176
    %2182 = vst.msk [vmem:[#allocation2 + $0x8] sm:$0xff] %vm2180, %v2179
    %s2183 = sld [smem:[#allocation3]]
    %p2184 = scmp.gt.s32.totalorder %s2183, 0
    %v2185 = vld [vmem:[#allocation2] sm:$0x1]
    %s2186 = vtos %v2185
    %s2187 = scalar_select %p2184, %s2186, 0.0
    %s2188 = sadd.f32 %s2187, 0.0
    %s2189 = sld [smem:[#allocation3 + $0x1]]
    %p2190 = scmp.gt.s32.totalorder %s2189, 0
    %v2191 = vld [vmem:[#allocation2 + $0x1] sm:$0x1]
    %s2192 = vtos %v2191
    %s2193 = scalar_select %p2190, %s2192, 0.0
    %s2194 = sadd.f32 %s2188, %s2193
    %s2195 = sld [smem:[#allocation3 + $0x2]]
    %p2196 = scmp.gt.s32.totalorder %s2195, 0
    %v2197 = vld [vmem:[#allocation2 + $0x2] sm:$0x1]
    %s2198 = vtos %v2197
    %s2199 = scalar_select %p2196, %s2198, 0.0
    %s2200 = sadd.f32 %s2194, %s2199
    %s2201 = sld [smem:[#allocation3 + $0x3]]
    %p2202 = scmp.gt.s32.totalorder %s2201, 0
    %v2203 = vld [vmem:[#allocation2 + $0x3] sm:$0x1]
    %s2204 = vtos %v2203
    %s2205 = scalar_select %p2202, %s2204, 0.0
    %s2206 = sadd.f32 %s2200, %s2205
    %s2207 = sld [smem:[#allocation3 + $0x4]]
    %p2208 = scmp.gt.s32.totalorder %s2207, 0
    %v2209 = vld [vmem:[#allocation2 + $0x4] sm:$0x1]
    %s2210 = vtos %v2209
    %s2211 = scalar_select %p2208, %s2210, 0.0
    %s2212 = sadd.f32 %s2206, %s2211
    %s2213 = sld [smem:[#allocation3 + $0x5]]
    %p2214 = scmp.gt.s32.totalorder %s2213, 0
    %v2215 = vld [vmem:[#allocation2 + $0x5] sm:$0x1]
    %s2216 = vtos %v2215
    %s2217 = scalar_select %p2214, %s2216, 0.0
    %s2218 = sadd.f32 %s2212, %s2217
    %s2219 = sld [smem:[#allocation3 + $0x6]]
    %p2220 = scmp.gt.s32.totalorder %s2219, 0
    %v2221 = vld [vmem:[#allocation2 + $0x6] sm:$0x1]
    %s2222 = vtos %v2221
    %s2223 = scalar_select %p2220, %s2222, 0.0
    %s2224 = sadd.f32 %s2218, %s2223
    %s2225 = sld [smem:[#allocation3 + $0x7]]
    %p2226 = scmp.gt.s32.totalorder %s2225, 0
    %v2227 = vld [vmem:[#allocation2 + $0x7] sm:$0x1]
    %s2228 = vtos %v2227
    %s2229 = scalar_select %p2226, %s2228, 0.0
    %s2230 = sadd.f32 %s2224, %s2229
    %s2231 = sld [smem:[#allocation3 + $0x8]]
    %p2232 = scmp.gt.s32.totalorder %s2231, 0
    %v2233 = vld [vmem:[#allocation2 + $0x8] sm:$0x1]
    %s2234 = vtos %v2233
    %s2235 = scalar_select %p2232, %s2234, 0.0
    %s2236 = sadd.f32 %s2230, %s2235
    %s2237 = sld [smem:[#allocation3 + $0x9]]
    %p2238 = scmp.gt.s32.totalorder %s2237, 0
    %v2239 = vld [vmem:[#allocation2 + $0x9] sm:$0x1]
    %s2240 = vtos %v2239
    %s2241 = scalar_select %p2238, %s2240, 0.0
    %s2242 = sadd.f32 %s2236, %s2241
    %s2243 = sld [smem:[#allocation3 + $0xa]]
    %p2244 = scmp.gt.s32.totalorder %s2243, 0
    %v2245 = vld [vmem:[#allocation2 + $0xa] sm:$0x1]
    %s2246 = vtos %v2245
    %s2247 = scalar_select %p2244, %s2246, 0.0
    %s2248 = sadd.f32 %s2242, %s2247
    %s2249 = sld [smem:[#allocation3 + $0xb]]
    %p2250 = scmp.gt.s32.totalorder %s2249, 0
    %v2251 = vld [vmem:[#allocation2 + $0xb] sm:$0x1]
    %s2252 = vtos %v2251
    %s2253 = scalar_select %p2250, %s2252, 0.0
    %s2254 = sadd.f32 %s2248, %s2253
    %s2255 = sld [smem:[#allocation3 + $0xc]]
    %p2256 = scmp.gt.s32.totalorder %s2255, 0
    %v2257 = vld [vmem:[#allocation2 + $0xc] sm:$0x1]
    %s2258 = vtos %v2257
    %s2259 = scalar_select %p2256, %s2258, 0.0
    %s2260 = sadd.f32 %s2254, %s2259
    %s2261 = sld [smem:[#allocation3 + $0xd]]
    %p2262 = scmp.gt.s32.totalorder %s2261, 0
    %v2263 = vld [vmem:[#allocation2 + $0xd] sm:$0x1]
    %s2264 = vtos %v2263
    %s2265 = scalar_select %p2262, %s2264, 0.0
    %s2266 = sadd.f32 %s2260, %s2265
    %s2267 = sld [smem:[#allocation3 + $0xe]]
    %p2268 = scmp.gt.s32.totalorder %s2267, 0
    %v2269 = vld [vmem:[#allocation2 + $0xe] sm:$0x1]
    %s2270 = vtos %v2269
    %s2271 = scalar_select %p2268, %s2270, 0.0
    %s2272 = sadd.f32 %s2266, %s2271
    %s2273 = sld [smem:[#allocation3 + $0xf]]
    %p2274 = scmp.gt.s32.totalorder %s2273, 0
    %v2275 = vld [vmem:[#allocation2 + $0xf] sm:$0x1]
    %s2276 = vtos %v2275
    %s2277 = scalar_select %p2274, %s2276, 0.0
    %s2278 = sadd.f32 %s2272, %s2277
    %s2279 = smul.f32 %s2278, 0.5
    %s2280 = scalar_lea.smem [#allocation8], 0
    %2281 = sst [smem:[%s2280]] %s2279
    // Predicated region
    $region70: #{tpu_custom_call.1} parent=1 // pred_check
      _
    $region71: #{tpu_custom_call.1} parent=1 // pred_check_branch
      %2283 = sbr.rel (0) target = $region73
    $region72: #{tpu_custom_call.1} parent=1 // pred_region
      %s2285 = ssub.s32 512, 512
      %2286 = vsyncadd [#allocation4], %s2285
      %s2287 = sshll.u32 [#allocation7], 4
      %s2288 = int_to_ptr.vmem [resolvable:$true] %s2287
      %2293 = dma.vmem_to_hbm [thread:$0]  %s2288, 512, %s16, [#allocation4], 256, 256, 16
    $region73: #{tpu_custom_call.1} parent=1 // pred_fallthru
      _
    // Predicated region
    $region74: #{tpu_custom_call.1} parent=1 // pred_check
      _
    $region75: #{tpu_custom_call.1} parent=1 // pred_check_branch
      %2295 = sbr.rel (0) target = $region77
    $region76: #{tpu_custom_call.1} parent=1 // pred_region
      %s2297 = ssub.s32 16, 16
      %2298 = vsyncadd [#allocation5], %s2297
      %2301 = dma.smem_to_hbm [#allocation8], 16, %s17, [#allocation5]
    $region77: #{tpu_custom_call.1} parent=1 // pred_fallthru
      _
    // Predicated region
    $region78: #{tpu_custom_call.1} parent=1 // pred_check
      _
    $region79: #{tpu_custom_call.1} parent=1 // pred_check_branch
      %2303 = sbr.rel (0) target = $region81
    $region80: #{tpu_custom_call.1} parent=1 // pred_region
      %2304 = dma.done [#allocation4], 512
    $region81: #{tpu_custom_call.1} parent=1 // pred_fallthru
      _
    // Predicated region
    $region82: #{tpu_custom_call.1} parent=1 // pred_check
      _
    $region83: #{tpu_custom_call.1} parent=1 // pred_check_branch
      %2306 = sbr.rel (0) target = $region85
    $region84: #{tpu_custom_call.1} parent=1 // pred_region
      %2307 = dma.done [#allocation5], 16
    $region85: #{tpu_custom_call.1} parent=1 // pred_fallthru
      _
    %2308 = sfence
    %2309 = vsyncpa [#allocation4], 1
    %2310 = vsyncpa [#allocation5], 1
    %2311 = vsyncpa [#allocation6], 1

</llo_original>
